<compile_context>
chip_gen: v6e
topology: v6e:2x2x1
jax: 0.10.0
libtpu: 0.0.40
codegen_flags: <defaults>
</compile_context>

<pallas_src>
import jax
import jax.numpy as jnp
from jax import lax
from jax.experimental import pallas as pl
from jax.experimental.pallas import tpu as pltpu


# tap order: dh-major, dw-minor (t = (dh+1)*3 + (dw+1)) — matches HWIO packing.
_TAPS = tuple((dh, dw) for dh in (-1, 0, 1) for dw in (-1, 0, 1))


def _padded_cin(cin):
    """Input channels padded to 8 sublanes, with room for the ones/bias channel."""
    return ((cin + 1 + 7) // 8) * 8


def make_gelayer_s1_kernel(H, W, n_img, cout, mxu_dtype):
    L = n_img * H * W                       # lane extent of one grid step
    offs = [dh * W + dw for (dh, dw) in _TAPS]

    def kernel(x_ref, mask_ref, w1_ref, wd_ref, bd_ref, w2_ref, b2_ref, out_ref):
        x = x_ref[0]                        # (CP, L): rows [0,Cin) data, row Cin ones, rest 0

        def shift_tap(src, t):
            # result[:, p] = src[:, p + offs[t]] with zeros outside the source image.
            off = offs[t]
            if off == 0:
                return src
            rolled = pltpu.roll(src, shift=(-off) % L, axis=1)   # XLU lane rotation
            return rolled * mask_ref[t]                          # host-built (1, L) mask

        # ---- conv1 (3x3, pad 1) + BN + ReLU: one im2col GEMM, epilogue = ReLU only.
        # Rows pre-broadcast to Cmid (row m = conv1 channel m // exp_ratio); BN scale
        # folded into w1; BN bias rides the ones channel of the center tap.
        im2col = jnp.concatenate([shift_tap(x, t) for t in range(9)], axis=0)  # (9*CP, L)
        feat1 = jnp.dot(w1_ref[...], im2col.astype(mxu_dtype),
                        preferred_element_type=jnp.float32)                    # (Cmid, L)
        feat1 = jnp.maximum(feat1, 0.0)

        # ---- depthwise 3x3 (groups=Cin) + BN + ReLU: pure VPU/XLU MAC, f32 on
        # purpose (v5e has no bf16 VALU; on v6e/v7x this stage may be cast to bf16,
        # or moved onto the MXU via a second im2col — benchmark option).
        acc = feat1 * wd_ref[4]                                  # center tap, no shift
        for t in range(9):
            if t == 4:
                continue
            acc = acc + shift_tap(feat1, t) * wd_ref[t]
        feat2 = jnp.maximum(acc + bd_ref[...], 0.0)              # (Cmid, L)

        # ---- conv2 (1x1) + BN, residual add, ReLU (lane-dense store).
        # b2 stays a broadcast add: appending a ones row to feat2 would force a
        # sublane-misaligned copy of the whole (Cmid, L) tensor for no MXU gain.
        y = jnp.dot(w2_ref[...], feat2.astype(mxu_dtype),
                    preferred_element_type=jnp.float32)          # (Cout, L)
        out_ref[0] = jnp.maximum(y + b2_ref[...] + x[:cout], 0.0)

    return kernel


def gelayer_s1(x_nchw, params, *, mxu_dtype=jnp.float32, images_per_step=1):
    """x_nchw: (N, Cin, H, W) f32. Returns (N, Cout, H, W) f32 (eval-mode BN folded)."""
    w1_b, wd_taps, bd_k, w2_cm, b2_k = params
    N, Cin, H, W = x_nchw.shape
    HW = H * W
    CP = _padded_cin(Cin)
    Cmid = wd_taps.shape[1]
    Cout = w2_cm.shape[0]
    assert Cout == Cin, "residual add requires out_chan == in_chan"
    assert w1_b.shape == (Cmid, 9 * CP)

    NB = images_per_step
    assert N % NB == 0
    G = N // NB
    L = NB * HW

    # (N,Cin,H,W) -> (G, Cin, NB*HW).  NB==1 is a free reshape; NB>1 folds NB
    # images onto the lane axis (one transpose outside the kernel).
    if NB == 1:
        x_g = x_nchw.reshape(G, Cin, L)
    else:
        x_g = (x_nchw.reshape(G, NB, Cin, HW)
               .transpose(0, 2, 1, 3)
               .reshape(G, Cin, L))

    # Channel pad to CP: data rows, then an all-ones row (conv1 BN-bias carrier),
    # then zero rows — keeps every im2col piece 8-sublane aligned.
    x_pad = jnp.concatenate(
        [x_g,
         jnp.ones((G, 1, L), jnp.float32),
         jnp.zeros((G, CP - Cin - 1, L), jnp.float32)], axis=1)

    # Per-tap validity masks, computed once on the host (kept resident in VMEM).
    pos = jnp.arange(L, dtype=jnp.int32) % HW
    h_idx, w_idx = pos // W, pos % W
    masks = jnp.stack(
        [((h_idx + dh >= 0) & (h_idx + dh < H) &
          (w_idx + dw >= 0) & (w_idx + dw < W)).astype(jnp.float32)
         for (dh, dw) in _TAPS]).reshape(9, 1, L)

    w1_k = w1_b.astype(mxu_dtype)
    w2_k = w2_cm.astype(mxu_dtype)

    grid_spec = pltpu.PrefetchScalarGridSpec(
        num_scalar_prefetch=0,
        grid=(G,),
        in_specs=[
            pl.BlockSpec((1, CP, L), lambda g: (g, 0, 0)),        # x (padded)
            pl.BlockSpec((9, 1, L), lambda g: (0, 0, 0)),         # boundary masks
            pl.BlockSpec((Cmid, 9 * CP), lambda g: (0, 0)),       # conv1 GEMM weight
            pl.BlockSpec((9, Cmid, 1), lambda g: (0, 0, 0)),      # depthwise taps
            pl.BlockSpec((Cmid, 1), lambda g: (0, 0)),            # depthwise BN bias
            pl.BlockSpec((Cout, Cmid), lambda g: (0, 0)),         # conv2 GEMM weight
            pl.BlockSpec((Cout, 1), lambda g: (0, 0)),            # conv2 BN bias
        ],
        out_specs=pl.BlockSpec((1, Cout, L), lambda g: (g, 0, 0)),
    )

    out_flat = pl.pallas_call(
        make_gelayer_s1_kernel(H, W, NB, Cout, mxu_dtype),
        out_shape=jax.ShapeDtypeStruct((G, Cout, L), jnp.float32),
        grid_spec=grid_spec,
        compiler_params=pltpu.CompilerParams(
            dimension_semantics=("parallel",),         # megacore / v7x 2-TC sharding
            vmem_limit_bytes=32 * 1024 * 1024),
    )(x_pad, masks, w1_k, wd_taps, bd_k, w2_k, b2_k)

    if NB == 1:
        return out_flat.reshape(N, Cout, H, W)
    return (out_flat.reshape(G, Cout, NB, HW)
            .transpose(0, 2, 1, 3)
            .reshape(N, Cout, H, W))


def fold_bn(key, c, eps=1e-5):
    """Deterministic eval-mode BatchNorm fold -> (scale, bias), each shape (c,)."""
    k1, k2, k3, k4 = jax.random.split(key, 4)
    gamma = jax.random.uniform(k1, (c,), minval=0.5, maxval=1.5)
    beta = jax.random.normal(k2, (c,)) * 0.1
    mean = jax.random.normal(k3, (c,)) * 0.1
    var = jax.random.uniform(k4, (c,), minval=0.5, maxval=1.5)
    scale = gamma / jnp.sqrt(var + eps)
    bias = beta - mean * scale
    return scale.astype(jnp.float32), bias.astype(jnp.float32)


def make_params(key, in_chan, out_chan, exp_ratio=6):
    mid_chan = in_chan * exp_ratio
    CP = _padded_cin(in_chan)
    ks = jax.random.split(key, 6)

    # conv1: HWIO (3,3,Cin,Cin)
    w1_hwio = (jax.random.normal(ks[0], (3, 3, in_chan, in_chan)) * 0.2).astype(jnp.float32)
    s1, b1 = fold_bn(ks[1], in_chan)
    # dwconv: grouped weights, HWIO-with-groups (3,3,1,Cmid)
    wd_hwio = (jax.random.normal(ks[2], (3, 3, 1, mid_chan)) * 0.2).astype(jnp.float32)
    sd, bd = fold_bn(ks[3], mid_chan)
    # conv2: 1x1, HWIO (1,1,Cmid,Cout)
    w2_hwio = (jax.random.normal(ks[4], (1, 1, mid_chan, out_chan)) * 0.2).astype(jnp.float32)
    s2, b2 = fold_bn(ks[5], out_chan)

    # ---- host-side BN folding + channel-major packing for the kernel ----
    # conv1 as one (Cmid, 9*CP) GEMM weight: column t*CP+ci = tap t, in-channel ci
    # (zero for padded channels).  BN scale folded into each output row; BN bias
    # sits in the ones-channel column of the center tap.  Rows pre-broadcast to
    # Cmid so the GEMM emits the depthwise input layout directly.
    w1_scaled = w1_hwio.reshape(9, in_chan, in_chan) * s1[None, None, :]
    w1_full = jnp.zeros((9, CP, in_chan), jnp.float32)
    w1_full = w1_full.at[:, :in_chan, :].set(w1_scaled)
    w1_full = w1_full.at[4, in_chan, :].set(b1)              # bias via ones channel, center tap
    w1_cm = jnp.transpose(w1_full, (2, 0, 1)).reshape(in_chan, 9 * CP)
    grp = jnp.arange(mid_chan) // exp_ratio
    w1_b = w1_cm[grp]                                         # (Cmid, 9*CP)

    # depthwise: per-channel tap weights with BN scale folded in; bias separate.
    wd_taps = (wd_hwio.reshape(9, mid_chan) * sd[None, :])[:, :, None]   # (9, Cmid, 1)
    bd_k = bd.reshape(mid_chan, 1)

    # conv2: (Cout, Cmid) with BN scale folded per row; bias separate.
    w2_cm = w2_hwio.reshape(mid_chan, out_chan).T * s2[:, None]
    b2_k = b2.reshape(out_chan, 1)

    kernel_params = (w1_b, wd_taps, bd_k, w2_cm, b2_k)
    ref_params = (w1_hwio, s1, b1, wd_hwio, sd, bd, w2_hwio, s2, b2)
    return kernel_params, ref_params


def gelayer_s1_reference(x_nhwc, ref_params):
    """Pure-JAX reference (lax conv) mirroring the PyTorch forward, in NHWC."""
    w1_hwio, s1, b1, wd_hwio, sd, bd, w2_hwio, s2, b2 = ref_params
    Cin = x_nhwc.shape[-1]
    dn = ('NHWC', 'HWIO', 'NHWC')

    def bn(f, s, b):
        return f * s.reshape(1, 1, 1, -1) + b.reshape(1, 1, 1, -1)

    f = lax.conv_general_dilated(x_nhwc, w1_hwio, (1, 1), ((1, 1), (1, 1)),
                                 dimension_numbers=dn)
    f = jnp.maximum(bn(f, s1, b1), 0.0)
    f = lax.conv_general_dilated(f, wd_hwio, (1, 1), ((1, 1), (1, 1)),
                                 dimension_numbers=dn,
                                 feature_group_count=Cin)
    f = jnp.maximum(bn(f, sd, bd), 0.0)
    f = lax.conv_general_dilated(f, w2_hwio, (1, 1), ((0, 0), (0, 0)),
                                 dimension_numbers=dn)
    f = bn(f, s2, b2)
    return jnp.maximum(f + x_nhwc, 0.0)


if __name__ == "__main__":
    key = jax.random.PRNGKey(0)
    k_x, k_p = jax.random.split(key)

    N, Cin, H, W = 2, 4, 16, 16        # small shapes; out_chan == in_chan (residual)
    Cout, exp_ratio = Cin, 6

    # PyTorch-convention NCHW input.
    x_nchw = jax.random.normal(k_x, (N, Cin, H, W), dtype=jnp.float32)
    kernel_params, ref_params = make_params(k_p, Cin, Cout, exp_ratio)

    # Pure-JAX reference of the PyTorch forward.
    x_nhwc = jnp.transpose(x_nchw, (0, 2, 3, 1))
    ref_nchw = jnp.transpose(
        jax.block_until_ready(gelayer_s1_reference(x_nhwc, ref_params)), (0, 3, 1, 2))

    # 1) f32 MXU path, one image per grid step (batch axis "parallel") — tight check.
    out_f32 = jax.block_until_ready(gelayer_s1(x_nchw, kernel_params))
    assert out_f32.shape == (N, Cout, H, W)
    assert jnp.allclose(out_f32, ref_nchw, atol=1e-4, rtol=1e-4), (
        float(jnp.max(jnp.abs(out_f32 - ref_nchw))))

    # 2) bf16 MXU operands (production path on v5e/v6e/v7x) + both images folded
    #    onto the lane axis of a single grid step.  Accumulation and the depthwise
    #    MAC stay f32, so only operand rounding widens the tolerance.
    out_bf16 = jax.block_until_ready(
        gelayer_s1(x_nchw, kernel_params, mxu_dtype=jnp.bfloat16, images_per_step=2))
    assert out_bf16.shape == (N, Cout, H, W)
    assert jnp.allclose(out_bf16, ref_nchw, atol=1.5e-1, rtol=1e-1), (
        float(jnp.max(jnp.abs(out_bf16 - ref_nchw))))

    print("KERNEL_OK")
</pallas_src>

<mosaic_0001>
module attributes {stable_mosaic.version = 11 : i64} {
  func.func @kernel(%arg0: i32, %arg1: memref<1x8x256xf32, #tpu.memory_space<vmem>>, %arg2: memref<9x1x256xf32, #tpu.memory_space<vmem>>, %arg3: memref<24x72xf32, #tpu.memory_space<vmem>>, %arg4: memref<9x24x1xf32, #tpu.memory_space<vmem>>, %arg5: memref<24x1xf32, #tpu.memory_space<vmem>>, %arg6: memref<4x24xf32, #tpu.memory_space<vmem>>, %arg7: memref<4x1xf32, #tpu.memory_space<vmem>>, %arg8: memref<1x4x256xf32, #tpu.memory_space<vmem>>) attributes {dimension_semantics = [#tpu.dimension_semantics<parallel>], iteration_bounds = array<i64: 2>, scalar_prefetch = 0 : i64, scratch_operands = 0 : i64, tpu.core_type = #tpu.core_type<tc>, window_params = [{transform_indices = @transform_0, window_bounds = array<i64: 1, 8, 256>}, {pipeline_mode = #tpu.pipeline_mode<synchronous>, transform_indices = @transform_1, window_bounds = array<i64: 9, 1, 256>}, {pipeline_mode = #tpu.pipeline_mode<synchronous>, transform_indices = @transform_2, window_bounds = array<i64: 24, 72>}, {pipeline_mode = #tpu.pipeline_mode<synchronous>, transform_indices = @transform_3, window_bounds = array<i64: 9, 24, 1>}, {pipeline_mode = #tpu.pipeline_mode<synchronous>, transform_indices = @transform_4, window_bounds = array<i64: 24, 1>}, {pipeline_mode = #tpu.pipeline_mode<synchronous>, transform_indices = @transform_5, window_bounds = array<i64: 4, 24>}, {pipeline_mode = #tpu.pipeline_mode<synchronous>, transform_indices = @transform_6, window_bounds = array<i64: 4, 1>}, {transform_indices = @transform_7, window_bounds = array<i64: 1, 4, 256>}]} {
    %c0 = arith.constant 0 : index
    %c0_0 = arith.constant 0 : index
    %c0_1 = arith.constant 0 : index
    %0 = vector.load %arg1[%c0, %c0_0, %c0_1] : memref<1x8x256xf32, #tpu.memory_space<vmem>>, vector<1x8x256xf32>
    %1 = vector.shape_cast %0 : vector<1x8x256xf32> to vector<8x256xf32>
    %c17_i32 = arith.constant 17 : i32
    %2 = tpu.dynamic_rotate %1 by %c17_i32 dim 1 : vector<8x256xf32>, i32 -> vector<8x256xf32>
    %c0_2 = arith.constant 0 : index
    %c0_3 = arith.constant 0 : index
    %c0_4 = arith.constant 0 : index
    %3 = vector.load %arg2[%c0_2, %c0_3, %c0_4] : memref<9x1x256xf32, #tpu.memory_space<vmem>>, vector<1x1x256xf32>
    %4 = vector.shape_cast %3 : vector<1x1x256xf32> to vector<1x256xf32>
    %5 = vector.broadcast %4 : vector<1x256xf32> to vector<8x256xf32>
    %6 = arith.mulf %2, %5 : vector<8x256xf32>
    %c16_i32 = arith.constant 16 : i32
    %7 = tpu.dynamic_rotate %1 by %c16_i32 dim 1 : vector<8x256xf32>, i32 -> vector<8x256xf32>
    %c1 = arith.constant 1 : index
    %c0_5 = arith.constant 0 : index
    %c0_6 = arith.constant 0 : index
    %8 = vector.load %arg2[%c1, %c0_5, %c0_6] : memref<9x1x256xf32, #tpu.memory_space<vmem>>, vector<1x1x256xf32>
    %9 = vector.shape_cast %8 : vector<1x1x256xf32> to vector<1x256xf32>
    %10 = vector.broadcast %9 : vector<1x256xf32> to vector<8x256xf32>
    %11 = arith.mulf %7, %10 : vector<8x256xf32>
    %c15_i32 = arith.constant 15 : i32
    %12 = tpu.dynamic_rotate %1 by %c15_i32 dim 1 : vector<8x256xf32>, i32 -> vector<8x256xf32>
    %c2 = arith.constant 2 : index
    %c0_7 = arith.constant 0 : index
    %c0_8 = arith.constant 0 : index
    %13 = vector.load %arg2[%c2, %c0_7, %c0_8] : memref<9x1x256xf32, #tpu.memory_space<vmem>>, vector<1x1x256xf32>
    %14 = vector.shape_cast %13 : vector<1x1x256xf32> to vector<1x256xf32>
    %15 = vector.broadcast %14 : vector<1x256xf32> to vector<8x256xf32>
    %16 = arith.mulf %12, %15 : vector<8x256xf32>
    %c1_i32 = arith.constant 1 : i32
    %17 = tpu.dynamic_rotate %1 by %c1_i32 dim 1 : vector<8x256xf32>, i32 -> vector<8x256xf32>
    %c3 = arith.constant 3 : index
    %c0_9 = arith.constant 0 : index
    %c0_10 = arith.constant 0 : index
    %18 = vector.load %arg2[%c3, %c0_9, %c0_10] : memref<9x1x256xf32, #tpu.memory_space<vmem>>, vector<1x1x256xf32>
    %19 = vector.shape_cast %18 : vector<1x1x256xf32> to vector<1x256xf32>
    %20 = vector.broadcast %19 : vector<1x256xf32> to vector<8x256xf32>
    %21 = arith.mulf %17, %20 : vector<8x256xf32>
    %c255_i32 = arith.constant 255 : i32
    %22 = tpu.dynamic_rotate %1 by %c255_i32 dim 1 : vector<8x256xf32>, i32 -> vector<8x256xf32>
    %c5 = arith.constant 5 : index
    %c0_11 = arith.constant 0 : index
    %c0_12 = arith.constant 0 : index
    %23 = vector.load %arg2[%c5, %c0_11, %c0_12] : memref<9x1x256xf32, #tpu.memory_space<vmem>>, vector<1x1x256xf32>
    %24 = vector.shape_cast %23 : vector<1x1x256xf32> to vector<1x256xf32>
    %25 = vector.broadcast %24 : vector<1x256xf32> to vector<8x256xf32>
    %26 = arith.mulf %22, %25 : vector<8x256xf32>
    %c241_i32 = arith.constant 241 : i32
    %27 = tpu.dynamic_rotate %1 by %c241_i32 dim 1 : vector<8x256xf32>, i32 -> vector<8x256xf32>
    %c6 = arith.constant 6 : index
    %c0_13 = arith.constant 0 : index
    %c0_14 = arith.constant 0 : index
    %28 = vector.load %arg2[%c6, %c0_13, %c0_14] : memref<9x1x256xf32, #tpu.memory_space<vmem>>, vector<1x1x256xf32>
    %29 = vector.shape_cast %28 : vector<1x1x256xf32> to vector<1x256xf32>
    %30 = vector.broadcast %29 : vector<1x256xf32> to vector<8x256xf32>
    %31 = arith.mulf %27, %30 : vector<8x256xf32>
    %c240_i32 = arith.constant 240 : i32
    %32 = tpu.dynamic_rotate %1 by %c240_i32 dim 1 : vector<8x256xf32>, i32 -> vector<8x256xf32>
    %c7 = arith.constant 7 : index
    %c0_15 = arith.constant 0 : index
    %c0_16 = arith.constant 0 : index
    %33 = vector.load %arg2[%c7, %c0_15, %c0_16] : memref<9x1x256xf32, #tpu.memory_space<vmem>>, vector<1x1x256xf32>
    %34 = vector.shape_cast %33 : vector<1x1x256xf32> to vector<1x256xf32>
    %35 = vector.broadcast %34 : vector<1x256xf32> to vector<8x256xf32>
    %36 = arith.mulf %32, %35 : vector<8x256xf32>
    %c239_i32 = arith.constant 239 : i32
    %37 = tpu.dynamic_rotate %1 by %c239_i32 dim 1 : vector<8x256xf32>, i32 -> vector<8x256xf32>
    %c8 = arith.constant 8 : index
    %c0_17 = arith.constant 0 : index
    %c0_18 = arith.constant 0 : index
    %38 = vector.load %arg2[%c8, %c0_17, %c0_18] : memref<9x1x256xf32, #tpu.memory_space<vmem>>, vector<1x1x256xf32>
    %39 = vector.shape_cast %38 : vector<1x1x256xf32> to vector<1x256xf32>
    %40 = vector.broadcast %39 : vector<1x256xf32> to vector<8x256xf32>
    %41 = arith.mulf %37, %40 : vector<8x256xf32>
    %42 = tpu.concatenate %6, %11, %16, %21, %1, %26, %31, %36, %41 in 0 : vector<8x256xf32>, vector<8x256xf32>, vector<8x256xf32>, vector<8x256xf32>, vector<8x256xf32>, vector<8x256xf32>, vector<8x256xf32>, vector<8x256xf32>, vector<8x256xf32> -> vector<72x256xf32>
    %c0_19 = arith.constant 0 : index
    %c0_20 = arith.constant 0 : index
    %43 = vector.load %arg3[%c0_19, %c0_20] : memref<24x72xf32, #tpu.memory_space<vmem>>, vector<24x72xf32>
    %cst = arith.constant dense<0.000000e+00> : vector<24x256xf32>
    %44 = tpu.matmul %43, %42, %cst {dimension_numbers = #tpu.dot_dimension_numbers<[1], [0], [0], [1], [0, 0, 1, 1], [], []>} : vector<24x72xf32>, vector<72x256xf32>, vector<24x256xf32> -> vector<24x256xf32>
    %cst_21 = arith.constant 0.000000e+00 : f32
    %45 = vector.broadcast %cst_21 : f32 to vector<24x256xf32>
    %46 = arith.maximumf %44, %45 : vector<24x256xf32>
    %c4 = arith.constant 4 : index
    %c0_22 = arith.constant 0 : index
    %c0_23 = arith.constant 0 : index
    %47 = vector.load %arg4[%c4, %c0_22, %c0_23] : memref<9x24x1xf32, #tpu.memory_space<vmem>>, vector<1x24x1xf32>
    %48 = vector.shape_cast %47 : vector<1x24x1xf32> to vector<24x1xf32>
    %49 = vector.broadcast %48 : vector<24x1xf32> to vector<24x256xf32>
    %50 = arith.mulf %46, %49 : vector<24x256xf32>
    %c17_i32_24 = arith.constant 17 : i32
    %51 = tpu.dynamic_rotate %46 by %c17_i32_24 dim 1 : vector<24x256xf32>, i32 -> vector<24x256xf32>
    %c0_25 = arith.constant 0 : index
    %c0_26 = arith.constant 0 : index
    %c0_27 = arith.constant 0 : index
    %52 = vector.load %arg2[%c0_25, %c0_26, %c0_27] : memref<9x1x256xf32, #tpu.memory_space<vmem>>, vector<1x1x256xf32>
    %53 = vector.shape_cast %52 : vector<1x1x256xf32> to vector<1x256xf32>
    %54 = vector.broadcast %53 : vector<1x256xf32> to vector<24x256xf32>
    %55 = arith.mulf %51, %54 : vector<24x256xf32>
    %c0_28 = arith.constant 0 : index
    %c0_29 = arith.constant 0 : index
    %c0_30 = arith.constant 0 : index
    %56 = vector.load %arg4[%c0_28, %c0_29, %c0_30] : memref<9x24x1xf32, #tpu.memory_space<vmem>>, vector<1x24x1xf32>
    %57 = vector.shape_cast %56 : vector<1x24x1xf32> to vector<24x1xf32>
    %58 = vector.broadcast %57 : vector<24x1xf32> to vector<24x256xf32>
    %59 = arith.mulf %55, %58 : vector<24x256xf32>
    %60 = arith.addf %50, %59 : vector<24x256xf32>
    %c16_i32_31 = arith.constant 16 : i32
    %61 = tpu.dynamic_rotate %46 by %c16_i32_31 dim 1 : vector<24x256xf32>, i32 -> vector<24x256xf32>
    %c1_32 = arith.constant 1 : index
    %c0_33 = arith.constant 0 : index
    %c0_34 = arith.constant 0 : index
    %62 = vector.load %arg2[%c1_32, %c0_33, %c0_34] : memref<9x1x256xf32, #tpu.memory_space<vmem>>, vector<1x1x256xf32>
    %63 = vector.shape_cast %62 : vector<1x1x256xf32> to vector<1x256xf32>
    %64 = vector.broadcast %63 : vector<1x256xf32> to vector<24x256xf32>
    %65 = arith.mulf %61, %64 : vector<24x256xf32>
    %c1_35 = arith.constant 1 : index
    %c0_36 = arith.constant 0 : index
    %c0_37 = arith.constant 0 : index
    %66 = vector.load %arg4[%c1_35, %c0_36, %c0_37] : memref<9x24x1xf32, #tpu.memory_space<vmem>>, vector<1x24x1xf32>
    %67 = vector.shape_cast %66 : vector<1x24x1xf32> to vector<24x1xf32>
    %68 = vector.broadcast %67 : vector<24x1xf32> to vector<24x256xf32>
    %69 = arith.mulf %65, %68 : vector<24x256xf32>
    %70 = arith.addf %60, %69 : vector<24x256xf32>
    %c15_i32_38 = arith.constant 15 : i32
    %71 = tpu.dynamic_rotate %46 by %c15_i32_38 dim 1 : vector<24x256xf32>, i32 -> vector<24x256xf32>
    %c2_39 = arith.constant 2 : index
    %c0_40 = arith.constant 0 : index
    %c0_41 = arith.constant 0 : index
    %72 = vector.load %arg2[%c2_39, %c0_40, %c0_41] : memref<9x1x256xf32, #tpu.memory_space<vmem>>, vector<1x1x256xf32>
    %73 = vector.shape_cast %72 : vector<1x1x256xf32> to vector<1x256xf32>
    %74 = vector.broadcast %73 : vector<1x256xf32> to vector<24x256xf32>
    %75 = arith.mulf %71, %74 : vector<24x256xf32>
    %c2_42 = arith.constant 2 : index
    %c0_43 = arith.constant 0 : index
    %c0_44 = arith.constant 0 : index
    %76 = vector.load %arg4[%c2_42, %c0_43, %c0_44] : memref<9x24x1xf32, #tpu.memory_space<vmem>>, vector<1x24x1xf32>
    %77 = vector.shape_cast %76 : vector<1x24x1xf32> to vector<24x1xf32>
    %78 = vector.broadcast %77 : vector<24x1xf32> to vector<24x256xf32>
    %79 = arith.mulf %75, %78 : vector<24x256xf32>
    %80 = arith.addf %70, %79 : vector<24x256xf32>
    %c1_i32_45 = arith.constant 1 : i32
    %81 = tpu.dynamic_rotate %46 by %c1_i32_45 dim 1 : vector<24x256xf32>, i32 -> vector<24x256xf32>
    %c3_46 = arith.constant 3 : index
    %c0_47 = arith.constant 0 : index
    %c0_48 = arith.constant 0 : index
    %82 = vector.load %arg2[%c3_46, %c0_47, %c0_48] : memref<9x1x256xf32, #tpu.memory_space<vmem>>, vector<1x1x256xf32>
    %83 = vector.shape_cast %82 : vector<1x1x256xf32> to vector<1x256xf32>
    %84 = vector.broadcast %83 : vector<1x256xf32> to vector<24x256xf32>
    %85 = arith.mulf %81, %84 : vector<24x256xf32>
    %c3_49 = arith.constant 3 : index
    %c0_50 = arith.constant 0 : index
    %c0_51 = arith.constant 0 : index
    %86 = vector.load %arg4[%c3_49, %c0_50, %c0_51] : memref<9x24x1xf32, #tpu.memory_space<vmem>>, vector<1x24x1xf32>
    %87 = vector.shape_cast %86 : vector<1x24x1xf32> to vector<24x1xf32>
    %88 = vector.broadcast %87 : vector<24x1xf32> to vector<24x256xf32>
    %89 = arith.mulf %85, %88 : vector<24x256xf32>
    %90 = arith.addf %80, %89 : vector<24x256xf32>
    %c255_i32_52 = arith.constant 255 : i32
    %91 = tpu.dynamic_rotate %46 by %c255_i32_52 dim 1 : vector<24x256xf32>, i32 -> vector<24x256xf32>
    %c5_53 = arith.constant 5 : index
    %c0_54 = arith.constant 0 : index
    %c0_55 = arith.constant 0 : index
    %92 = vector.load %arg2[%c5_53, %c0_54, %c0_55] : memref<9x1x256xf32, #tpu.memory_space<vmem>>, vector<1x1x256xf32>
    %93 = vector.shape_cast %92 : vector<1x1x256xf32> to vector<1x256xf32>
    %94 = vector.broadcast %93 : vector<1x256xf32> to vector<24x256xf32>
    %95 = arith.mulf %91, %94 : vector<24x256xf32>
    %c5_56 = arith.constant 5 : index
    %c0_57 = arith.constant 0 : index
    %c0_58 = arith.constant 0 : index
    %96 = vector.load %arg4[%c5_56, %c0_57, %c0_58] : memref<9x24x1xf32, #tpu.memory_space<vmem>>, vector<1x24x1xf32>
    %97 = vector.shape_cast %96 : vector<1x24x1xf32> to vector<24x1xf32>
    %98 = vector.broadcast %97 : vector<24x1xf32> to vector<24x256xf32>
    %99 = arith.mulf %95, %98 : vector<24x256xf32>
    %100 = arith.addf %90, %99 : vector<24x256xf32>
    %c241_i32_59 = arith.constant 241 : i32
    %101 = tpu.dynamic_rotate %46 by %c241_i32_59 dim 1 : vector<24x256xf32>, i32 -> vector<24x256xf32>
    %c6_60 = arith.constant 6 : index
    %c0_61 = arith.constant 0 : index
    %c0_62 = arith.constant 0 : index
    %102 = vector.load %arg2[%c6_60, %c0_61, %c0_62] : memref<9x1x256xf32, #tpu.memory_space<vmem>>, vector<1x1x256xf32>
    %103 = vector.shape_cast %102 : vector<1x1x256xf32> to vector<1x256xf32>
    %104 = vector.broadcast %103 : vector<1x256xf32> to vector<24x256xf32>
    %105 = arith.mulf %101, %104 : vector<24x256xf32>
    %c6_63 = arith.constant 6 : index
    %c0_64 = arith.constant 0 : index
    %c0_65 = arith.constant 0 : index
    %106 = vector.load %arg4[%c6_63, %c0_64, %c0_65] : memref<9x24x1xf32, #tpu.memory_space<vmem>>, vector<1x24x1xf32>
    %107 = vector.shape_cast %106 : vector<1x24x1xf32> to vector<24x1xf32>
    %108 = vector.broadcast %107 : vector<24x1xf32> to vector<24x256xf32>
    %109 = arith.mulf %105, %108 : vector<24x256xf32>
    %110 = arith.addf %100, %109 : vector<24x256xf32>
    %c240_i32_66 = arith.constant 240 : i32
    %111 = tpu.dynamic_rotate %46 by %c240_i32_66 dim 1 : vector<24x256xf32>, i32 -> vector<24x256xf32>
    %c7_67 = arith.constant 7 : index
    %c0_68 = arith.constant 0 : index
    %c0_69 = arith.constant 0 : index
    %112 = vector.load %arg2[%c7_67, %c0_68, %c0_69] : memref<9x1x256xf32, #tpu.memory_space<vmem>>, vector<1x1x256xf32>
    %113 = vector.shape_cast %112 : vector<1x1x256xf32> to vector<1x256xf32>
    %114 = vector.broadcast %113 : vector<1x256xf32> to vector<24x256xf32>
    %115 = arith.mulf %111, %114 : vector<24x256xf32>
    %c7_70 = arith.constant 7 : index
    %c0_71 = arith.constant 0 : index
    %c0_72 = arith.constant 0 : index
    %116 = vector.load %arg4[%c7_70, %c0_71, %c0_72] : memref<9x24x1xf32, #tpu.memory_space<vmem>>, vector<1x24x1xf32>
    %117 = vector.shape_cast %116 : vector<1x24x1xf32> to vector<24x1xf32>
    %118 = vector.broadcast %117 : vector<24x1xf32> to vector<24x256xf32>
    %119 = arith.mulf %115, %118 : vector<24x256xf32>
    %120 = arith.addf %110, %119 : vector<24x256xf32>
    %c239_i32_73 = arith.constant 239 : i32
    %121 = tpu.dynamic_rotate %46 by %c239_i32_73 dim 1 : vector<24x256xf32>, i32 -> vector<24x256xf32>
    %c8_74 = arith.constant 8 : index
    %c0_75 = arith.constant 0 : index
    %c0_76 = arith.constant 0 : index
    %122 = vector.load %arg2[%c8_74, %c0_75, %c0_76] : memref<9x1x256xf32, #tpu.memory_space<vmem>>, vector<1x1x256xf32>
    %123 = vector.shape_cast %122 : vector<1x1x256xf32> to vector<1x256xf32>
    %124 = vector.broadcast %123 : vector<1x256xf32> to vector<24x256xf32>
    %125 = arith.mulf %121, %124 : vector<24x256xf32>
    %c8_77 = arith.constant 8 : index
    %c0_78 = arith.constant 0 : index
    %c0_79 = arith.constant 0 : index
    %126 = vector.load %arg4[%c8_77, %c0_78, %c0_79] : memref<9x24x1xf32, #tpu.memory_space<vmem>>, vector<1x24x1xf32>
    %127 = vector.shape_cast %126 : vector<1x24x1xf32> to vector<24x1xf32>
    %128 = vector.broadcast %127 : vector<24x1xf32> to vector<24x256xf32>
    %129 = arith.mulf %125, %128 : vector<24x256xf32>
    %130 = arith.addf %120, %129 : vector<24x256xf32>
    %c0_80 = arith.constant 0 : index
    %c0_81 = arith.constant 0 : index
    %131 = vector.load %arg5[%c0_80, %c0_81] : memref<24x1xf32, #tpu.memory_space<vmem>>, vector<24x1xf32>
    %132 = vector.broadcast %131 : vector<24x1xf32> to vector<24x256xf32>
    %133 = arith.addf %130, %132 : vector<24x256xf32>
    %cst_82 = arith.constant 0.000000e+00 : f32
    %134 = vector.broadcast %cst_82 : f32 to vector<24x256xf32>
    %135 = arith.maximumf %133, %134 : vector<24x256xf32>
    %c0_83 = arith.constant 0 : index
    %c0_84 = arith.constant 0 : index
    %136 = vector.load %arg6[%c0_83, %c0_84] : memref<4x24xf32, #tpu.memory_space<vmem>>, vector<4x24xf32>
    %cst_85 = arith.constant dense<0.000000e+00> : vector<4x256xf32>
    %137 = tpu.matmul %136, %135, %cst_85 {dimension_numbers = #tpu.dot_dimension_numbers<[1], [0], [0], [1], [0, 0, 1, 1], [], []>} : vector<4x24xf32>, vector<24x256xf32>, vector<4x256xf32> -> vector<4x256xf32>
    %c0_86 = arith.constant 0 : index
    %c0_87 = arith.constant 0 : index
    %138 = vector.load %arg7[%c0_86, %c0_87] : memref<4x1xf32, #tpu.memory_space<vmem>>, vector<4x1xf32>
    %139 = vector.broadcast %138 : vector<4x1xf32> to vector<4x256xf32>
    %140 = arith.addf %137, %139 : vector<4x256xf32>
    %141 = vector.extract_strided_slice %1 {offsets = [0, 0], sizes = [4, 256], strides = [1, 1]} : vector<8x256xf32> to vector<4x256xf32>
    %142 = arith.addf %140, %141 : vector<4x256xf32>
    %cst_88 = arith.constant 0.000000e+00 : f32
    %143 = vector.broadcast %cst_88 : f32 to vector<4x256xf32>
    %144 = arith.maximumf %142, %143 : vector<4x256xf32>
    %c0_89 = arith.constant 0 : index
    %c0_90 = arith.constant 0 : index
    %c0_91 = arith.constant 0 : index
    %145 = vector.load %arg8[%c0_89, %c0_90, %c0_91] : memref<1x4x256xf32, #tpu.memory_space<vmem>>, vector<1x4x256xf32>
    %146 = vector.shape_cast %145 : vector<1x4x256xf32> to vector<4x256xf32>
    %147 = vector.shape_cast %144 : vector<4x256xf32> to vector<1x4x256xf32>
    tpu.vector_store %arg8[%c0_89, %c0_90, %c0_91], %147 {strides = array<i32>} : memref<1x4x256xf32, #tpu.memory_space<vmem>>, vector<1x4x256xf32>,
    return
  }
  func.func @transform_0(%arg0: i32) -> (i32, i32, i32) {
    %c0_i32 = arith.constant 0 : i32
    %c0_i32_0 = arith.constant 0 : i32
    %c0_i32_1 = arith.constant 0 : i32
    return %arg0, %c0_i32, %c0_i32_0 : i32, i32, i32
  }
  func.func @transform_1(%arg0: i32) -> (i32, i32, i32) {
    %c0_i32 = arith.constant 0 : i32
    %c0_i32_0 = arith.constant 0 : i32
    %c0_i32_1 = arith.constant 0 : i32
    %c0_i32_2 = arith.constant 0 : i32
    return %c0_i32, %c0_i32_0, %c0_i32_1 : i32, i32, i32
  }
  func.func @transform_2(%arg0: i32) -> (i32, i32) {
    %c0_i32 = arith.constant 0 : i32
    %c0_i32_0 = arith.constant 0 : i32
    %c0_i32_1 = arith.constant 0 : i32
    return %c0_i32, %c0_i32_0 : i32, i32
  }
  func.func @transform_3(%arg0: i32) -> (i32, i32, i32) {
    %c0_i32 = arith.constant 0 : i32
    %c0_i32_0 = arith.constant 0 : i32
    %c0_i32_1 = arith.constant 0 : i32
    %c0_i32_2 = arith.constant 0 : i32
    return %c0_i32, %c0_i32_0, %c0_i32_1 : i32, i32, i32
  }
  func.func @transform_4(%arg0: i32) -> (i32, i32) {
    %c0_i32 = arith.constant 0 : i32
    %c0_i32_0 = arith.constant 0 : i32
    %c0_i32_1 = arith.constant 0 : i32
    return %c0_i32, %c0_i32_0 : i32, i32
  }
  func.func @transform_5(%arg0: i32) -> (i32, i32) {
    %c0_i32 = arith.constant 0 : i32
    %c0_i32_0 = arith.constant 0 : i32
    %c0_i32_1 = arith.constant 0 : i32
    return %c0_i32, %c0_i32_0 : i32, i32
  }
  func.func @transform_6(%arg0: i32) -> (i32, i32) {
    %c0_i32 = arith.constant 0 : i32
    %c0_i32_0 = arith.constant 0 : i32
    %c0_i32_1 = arith.constant 0 : i32
    return %c0_i32, %c0_i32_0 : i32, i32
  }
  func.func @transform_7(%arg0: i32) -> (i32, i32, i32) {
    %c0_i32 = arith.constant 0 : i32
    %c0_i32_0 = arith.constant 0 : i32
    %c0_i32_1 = arith.constant 0 : i32
    return %arg0, %c0_i32, %c0_i32_0 : i32, i32, i32
  }
}

</mosaic_0001>

<llo_original>
// kernel: tpu_custom_call.1
$region0: #{tpu_custom_call.1}
  #allocation0 [shape = 'u32[]', space=smem, size = 0x4, offset = 0x4, fixed_abs, tag = 'smem constant byte address 0x4 - core index']
  #allocation1 [shape = 'u32[144,128]{1,0:T(1,128)}', space=vmem, size = 0x12000, scoped, tag = 'internal scratch']
  %s0 = inlined_call_operand.vmem [shape: f32[2,8,256], index: 0, kind: input, shape index: {}]
  %s1 = inlined_call_operand.vmem [shape: f32[9,1,256], index: 1, kind: input, shape index: {}]
  %s2 = inlined_call_operand.vmem [shape: f32[24,72], index: 2, kind: input, shape index: {}]
  %s3 = inlined_call_operand.vmem [shape: f32[9,24,1], index: 3, kind: input, shape index: {}]
  %s4 = inlined_call_operand.vmem [shape: f32[24,1], index: 4, kind: input, shape index: {}]
  %s5 = inlined_call_operand.vmem [shape: f32[4,24], index: 5, kind: input, shape index: {}]
  %s6 = inlined_call_operand.vmem [shape: f32[4,1], index: 6, kind: input, shape index: {}]
  %s7 = inlined_call_operand.hbm [shape: f32[2,4,256], index: 7, kind: output, shape index: {}]
  %s8 = sld [smem:[#allocation0]]
  $region61: #{tpu_custom_call.1} parent=0
    _
  %s10 = ssub.s32 1, %s8
  %s11 = scalar_select 0, %s10, %s8
  $region1: #{tpu_custom_call.1} parent=0
    #allocation2 [shape = 'u8[8192]{0}', space=vmem, size = 0x2000, scoped, tag = 'output window, operand 0']
    #allocation3 [shape = 's32[2]{0}', space=sflag, size = 0x8, scoped, tag = 'scoped memory for tpu_custom_call.1']
    %12 = vsyncpa [#allocation3], 0
    %s13 = scalar_lea.sflag [#allocation3], 1
    %14 = vsyncpa %s13, 0
    loop: start=0, step=1, limit=4
    $region2: #{tpu_custom_call.1} parent=1 // loop_pre_header
      _
    $region3: #{tpu_custom_call.1} parent=1 // loop_header
      %s16 = sphi 0, %s20
      %p17 = scmp.ge.s32.totalorder %s16, 4
      %s26 = sphi 0, %s28
      %s29 = sphi 0, %s26
      %s30 = sphi 0, %s29
      %s46 = sphi 0, %s30
      %s50 = sphi 0, %s50
      %s52 = sphi 0, %s50
      %s53 = sphi 0, %s52
      %s67 = sphi 0, %s53
      %s71 = sphi 0, %s71
      %s73 = sphi 0, %s71
      %s74 = sphi 0, %s73
      %s88 = sphi 0, %s74
      %s92 = sphi 0, %s92
      %s94 = sphi 0, %s92
      %s95 = sphi 0, %s94
      %s109 = sphi 0, %s95
      %s113 = sphi 0, %s113
      %s115 = sphi 0, %s113
      %s116 = sphi 0, %s115
      %s130 = sphi 0, %s116
      %s134 = sphi 0, %s134
      %s136 = sphi 0, %s134
      %s137 = sphi 0, %s136
      %s151 = sphi 0, %s137
      %s155 = sphi 0, %s155
      %s157 = sphi 0, %s155
      %s158 = sphi 0, %s157
      %s172 = sphi 0, %s158
      %s178 = sphi 0, %s180
      %s181 = sphi 0, %s178
      %s182 = sphi 0, %s181
      %s198 = sphi 0, %s182
    $region4: #{tpu_custom_call.1} parent=1 // loop_header_branch
      %19 = sbr.rel (%p17) target = $region8
    $region5: #{tpu_custom_call.1} parent=1 // loop_body
      %s21 = ssub.s32 %s16, 1
      %s22 = ssub.s32 %s16, 2
      %s23 = sadd.s32 %s16, 1
      %s24 = ssub.s32 %s16, %s23
      %p25 = scmp.eq.s32.totalorder %s24, 0
      %s27 = sadd.s32 %s26, 1
      %s28 = scalar_select %p25, %s26, %s27
      %p31 = pneg %p25
      %p32 = scmp.eq.s32.totalorder %s16, 1
      %p33 = por %p31, %p32
      %p34 = scmp.ne.s32.totalorder %s26, %s29
      %p35 = scmp.eq.s32.totalorder %s16, 0
      %p36 = por %p34, %p35
      %p37 = scmp.ne.s32.totalorder %s26, %s29
      %p38 = scmp.eq.s32.totalorder %s21, 1
      %p39 = por %p37, %p38
      %p40 = scmp.ne.s32.totalorder %s29, %s30
      %p41 = scmp.eq.s32.totalorder %s21, 0
      %p42 = por %p40, %p41
      %p43 = scmp.ne.s32.totalorder %s29, %s30
      %p44 = scmp.eq.s32.totalorder %s22, 1
      %p45 = por %p43, %p44
      %p47 = scmp.ne.s32.totalorder %s30, %s46
      %p48 = scmp.eq.s32.totalorder %s22, 0
      %p49 = por %p47, %p48
      %s51 = sadd.s32 %s50, 1
      %p54 = scmp.eq.s32.totalorder %s16, 1
      %p55 = scmp.ne.s32.totalorder %s50, %s52
      %p56 = scmp.eq.s32.totalorder %s16, 0
      %p57 = por %p55, %p56
      %p58 = scmp.ne.s32.totalorder %s50, %s52
      %p59 = scmp.eq.s32.totalorder %s21, 1
      %p60 = por %p58, %p59
      %p61 = scmp.ne.s32.totalorder %s52, %s53
      %p62 = scmp.eq.s32.totalorder %s21, 0
      %p63 = por %p61, %p62
      %p64 = scmp.ne.s32.totalorder %s52, %s53
      %p65 = scmp.eq.s32.totalorder %s22, 1
      %p66 = por %p64, %p65
      %p68 = scmp.ne.s32.totalorder %s53, %s67
      %p69 = scmp.eq.s32.totalorder %s22, 0
      %p70 = por %p68, %p69
      %s72 = sadd.s32 %s71, 1
      %p75 = scmp.eq.s32.totalorder %s16, 1
      %p76 = scmp.ne.s32.totalorder %s71, %s73
      %p77 = scmp.eq.s32.totalorder %s16, 0
      %p78 = por %p76, %p77
      %p79 = scmp.ne.s32.totalorder %s71, %s73
      %p80 = scmp.eq.s32.totalorder %s21, 1
      %p81 = por %p79, %p80
      %p82 = scmp.ne.s32.totalorder %s73, %s74
      %p83 = scmp.eq.s32.totalorder %s21, 0
      %p84 = por %p82, %p83
      %p85 = scmp.ne.s32.totalorder %s73, %s74
      %p86 = scmp.eq.s32.totalorder %s22, 1
      %p87 = por %p85, %p86
      %p89 = scmp.ne.s32.totalorder %s74, %s88
      %p90 = scmp.eq.s32.totalorder %s22, 0
      %p91 = por %p89, %p90
      %s93 = sadd.s32 %s92, 1
      %p96 = scmp.eq.s32.totalorder %s16, 1
      %p97 = scmp.ne.s32.totalorder %s92, %s94
      %p98 = scmp.eq.s32.totalorder %s16, 0
      %p99 = por %p97, %p98
      %p100 = scmp.ne.s32.totalorder %s92, %s94
      %p101 = scmp.eq.s32.totalorder %s21, 1
      %p102 = por %p100, %p101
      %p103 = scmp.ne.s32.totalorder %s94, %s95
      %p104 = scmp.eq.s32.totalorder %s21, 0
      %p105 = por %p103, %p104
      %p106 = scmp.ne.s32.totalorder %s94, %s95
      %p107 = scmp.eq.s32.totalorder %s22, 1
      %p108 = por %p106, %p107
      %p110 = scmp.ne.s32.totalorder %s95, %s109
      %p111 = scmp.eq.s32.totalorder %s22, 0
      %p112 = por %p110, %p111
      %s114 = sadd.s32 %s113, 1
      %p117 = scmp.eq.s32.totalorder %s16, 1
      %p118 = scmp.ne.s32.totalorder %s113, %s115
      %p119 = scmp.eq.s32.totalorder %s16, 0
      %p120 = por %p118, %p119
      %p121 = scmp.ne.s32.totalorder %s113, %s115
      %p122 = scmp.eq.s32.totalorder %s21, 1
      %p123 = por %p121, %p122
      %p124 = scmp.ne.s32.totalorder %s115, %s116
      %p125 = scmp.eq.s32.totalorder %s21, 0
      %p126 = por %p124, %p125
      %p127 = scmp.ne.s32.totalorder %s115, %s116
      %p128 = scmp.eq.s32.totalorder %s22, 1
      %p129 = por %p127, %p128
      %p131 = scmp.ne.s32.totalorder %s116, %s130
      %p132 = scmp.eq.s32.totalorder %s22, 0
      %p133 = por %p131, %p132
      %s135 = sadd.s32 %s134, 1
      %p138 = scmp.eq.s32.totalorder %s16, 1
      %p139 = scmp.ne.s32.totalorder %s134, %s136
      %p140 = scmp.eq.s32.totalorder %s16, 0
      %p141 = por %p139, %p140
      %p142 = scmp.ne.s32.totalorder %s134, %s136
      %p143 = scmp.eq.s32.totalorder %s21, 1
      %p144 = por %p142, %p143
      %p145 = scmp.ne.s32.totalorder %s136, %s137
      %p146 = scmp.eq.s32.totalorder %s21, 0
      %p147 = por %p145, %p146
      %p148 = scmp.ne.s32.totalorder %s136, %s137
      %p149 = scmp.eq.s32.totalorder %s22, 1
      %p150 = por %p148, %p149
      %p152 = scmp.ne.s32.totalorder %s137, %s151
      %p153 = scmp.eq.s32.totalorder %s22, 0
      %p154 = por %p152, %p153
      %s156 = sadd.s32 %s155, 1
      %p159 = scmp.eq.s32.totalorder %s16, 1
      %p160 = scmp.ne.s32.totalorder %s155, %s157
      %p161 = scmp.eq.s32.totalorder %s16, 0
      %p162 = por %p160, %p161
      %p163 = scmp.ne.s32.totalorder %s155, %s157
      %p164 = scmp.eq.s32.totalorder %s21, 1
      %p165 = por %p163, %p164
      %p166 = scmp.ne.s32.totalorder %s157, %s158
      %p167 = scmp.eq.s32.totalorder %s21, 0
      %p168 = por %p166, %p167
      %p169 = scmp.ne.s32.totalorder %s157, %s158
      %p170 = scmp.eq.s32.totalorder %s22, 1
      %p171 = por %p169, %p170
      %p173 = scmp.ne.s32.totalorder %s158, %s172
      %p174 = scmp.eq.s32.totalorder %s22, 0
      %p175 = por %p173, %p174
      %s176 = ssub.s32 %s16, %s23
      %p177 = scmp.eq.s32.totalorder %s176, 0
      %s179 = sadd.s32 %s178, 1
      %s180 = scalar_select %p177, %s178, %s179
      %p183 = pneg %p177
      %p184 = scmp.eq.s32.totalorder %s16, 1
      %p185 = por %p183, %p184
      %p186 = scmp.ne.s32.totalorder %s178, %s181
      %p187 = scmp.eq.s32.totalorder %s16, 0
      %p188 = por %p186, %p187
      %p189 = scmp.ne.s32.totalorder %s178, %s181
      %p190 = scmp.eq.s32.totalorder %s21, 1
      %p191 = por %p189, %p190
      %p192 = scmp.ne.s32.totalorder %s181, %s182
      %p193 = scmp.eq.s32.totalorder %s21, 0
      %p194 = por %p192, %p193
      %p195 = scmp.ne.s32.totalorder %s181, %s182
      %p196 = scmp.eq.s32.totalorder %s22, 1
      %p197 = por %p195, %p196
      %p199 = scmp.ne.s32.totalorder %s182, %s198
      %p200 = scmp.eq.s32.totalorder %s22, 0
      %p201 = por %p199, %p200
      %p202 = scmp.le.s32.totalorder 1, %s16
      %p203 = scmp.lt.s32.totalorder %s16, 3
      %p204 = pnand %p202, %p203
      %p205 = pneg %p204
      // Predicated region
      $region9: #{tpu_custom_call.1} parent=5 // pred_check
        _
      $region10: #{tpu_custom_call.1} parent=5 // pred_check_branch
        %207 = sbr.rel (%p204) target = $region12
      $region11: #{tpu_custom_call.1} parent=5 // pred_region
        %s208 = ssub.s32 %s16, 1
        // Predicated region
        $region13: #{tpu_custom_call.1} parent=11 // pred_check
          %p209 = pneg %p63
        $region14: #{tpu_custom_call.1} parent=11 // pred_check_branch
          %211 = sbr.rel (%p209) target = $region16
        $region15: #{tpu_custom_call.1} parent=11 // pred_region
          _
        $region16: #{tpu_custom_call.1} parent=11 // pred_fallthru
          _
        // Predicated region
        $region17: #{tpu_custom_call.1} parent=11 // pred_check
          %p212 = pneg %p84
        $region18: #{tpu_custom_call.1} parent=11 // pred_check_branch
          %214 = sbr.rel (%p212) target = $region20
        $region19: #{tpu_custom_call.1} parent=11 // pred_region
          _
        $region20: #{tpu_custom_call.1} parent=11 // pred_fallthru
          _
        // Predicated region
        $region21: #{tpu_custom_call.1} parent=11 // pred_check
          %p215 = pneg %p105
        $region22: #{tpu_custom_call.1} parent=11 // pred_check_branch
          %217 = sbr.rel (%p215) target = $region24
        $region23: #{tpu_custom_call.1} parent=11 // pred_region
          _
        $region24: #{tpu_custom_call.1} parent=11 // pred_fallthru
          _
        // Predicated region
        $region25: #{tpu_custom_call.1} parent=11 // pred_check
          %p218 = pneg %p126
        $region26: #{tpu_custom_call.1} parent=11 // pred_check_branch
          %220 = sbr.rel (%p218) target = $region28
        $region27: #{tpu_custom_call.1} parent=11 // pred_region
          _
        $region28: #{tpu_custom_call.1} parent=11 // pred_fallthru
          _
        // Predicated region
        $region29: #{tpu_custom_call.1} parent=11 // pred_check
          %p221 = pneg %p147
        $region30: #{tpu_custom_call.1} parent=11 // pred_check_branch
          %223 = sbr.rel (%p221) target = $region32
        $region31: #{tpu_custom_call.1} parent=11 // pred_region
          _
        $region32: #{tpu_custom_call.1} parent=11 // pred_fallthru
          _
        // Predicated region
        $region33: #{tpu_custom_call.1} parent=11 // pred_check
          %p224 = pneg %p168
        $region34: #{tpu_custom_call.1} parent=11 // pred_check_branch
          %226 = sbr.rel (%p224) target = $region36
        $region35: #{tpu_custom_call.1} parent=11 // pred_region
          _
        $region36: #{tpu_custom_call.1} parent=11 // pred_fallthru
          _
      $region12: #{tpu_custom_call.1} parent=5 // pred_fallthru
        _
      %p227 = scmp.lt.s32.totalorder %s16, 2
      // Predicated region
      $region37: #{tpu_custom_call.1} parent=5 // pred_check
        %p228 = pneg %p227
      $region38: #{tpu_custom_call.1} parent=5 // pred_check_branch
        %230 = sbr.rel (%p228) target = $region40
      $region39: #{tpu_custom_call.1} parent=5 // pred_region
        // Predicated region
        $region41: #{tpu_custom_call.1} parent=39 // pred_check
          %p231 = pneg %p36
        $region42: #{tpu_custom_call.1} parent=39 // pred_check_branch
          %233 = sbr.rel (%p231) target = $region44
        $region43: #{tpu_custom_call.1} parent=39 // pred_region
          %p234 = scmp.lt.s32.totalorder %s16, 1
          %s235 = scalar_select %p234, %s16, 1
          %s236 = smul.addr %s235, 2
          %s237 = smul.addr %s236, 8
          %s238 = scalar_lea.vmem %s0, %s237
        $region44: #{tpu_custom_call.1} parent=39 // pred_fallthru
          _
      $region40: #{tpu_custom_call.1} parent=5 // pred_fallthru
        _
      %p239 = scmp.le.s32.totalorder 1, %s16
      %p240 = scmp.lt.s32.totalorder %s16, 3
      %p241 = pnand %p239, %p240
      %p242 = pneg %p241
      // Predicated region
      $region45: #{tpu_custom_call.1} parent=5 // pred_check
        _
      $region46: #{tpu_custom_call.1} parent=5 // pred_check_branch
        %244 = sbr.rel (%p241) target = $region48
      $region47: #{tpu_custom_call.1} parent=5 // pred_region
        %s245 = ssub.s32 %s16, 1
        %p246 = scmp.lt.s32.totalorder %s21, 1
        %s247 = scalar_select %p246, %s21, 1
        %s248 = smul.addr %s247, 2
        %s249 = smul.addr %s248, 8
        %s250 = scalar_lea.vmem %s0, %s249
        %p251 = pneg %p42
        %p252 = pneg %p39
        %p253 = pneg %p63
        %p254 = pneg %p60
        %p255 = pneg %p84
        %p256 = pneg %p81
        %p257 = pneg %p105
        %p258 = pneg %p102
        %p259 = pneg %p126
        %p260 = pneg %p123
        %p261 = pneg %p147
        %p262 = pneg %p144
        %p263 = pneg %p168
        %p264 = pneg %p165
        %p265 = pneg %p194
        %p266 = pneg %p191
        %s267 = sand.u32 %s181, 1
        %s268 = scalar_lea.sflag [#allocation3], %s267
        %s269 = sand.u32 %s181, 1
        %s270 = smul.addr %s269, 8
        %s271 = scalar_lea.vmem [#allocation2], %s270
        %p272 = scmp.lt.s32.totalorder %s21, 1
        %s273 = scalar_select %p272, %s21, 1
        %s274 = smul.addr %s273, 2
        %s275 = smul.addr %s274, 8
        %s276 = scalar_lea.vmem %s0, %s275
        %v277 = vld [vmem:[%s276] sm:$0xff]
        %v278 = vld [vmem:[%s276 + $0x8] sm:$0xff]
        %279 = vrot.lane.b32.xlu0 %v277, 17
        %v280 = vpop.permute.xlu0 %279
        %281 = vrot.lane.b32.xlu0 %v278, 17
        %v282 = vpop.permute.xlu0 %281
        %v283 = vlaneseq
        %v284 = vand.u32 %v283, 127
        %vm285 = vcmp.lt.s32.totalorder %v284, 17
        %v286 = vsel %vm285, %v280, %v282
        %v287 = vsel %vm285, %v282, %v280
        %v288 = vld [vmem:[%s1] sm:$0x3]
        %v290 = vlaneseq
        %v291 = vshrl.u32 %v290, 7
        %v292 = vsub.s32 0, %v291
        %v293 = vrot.slane %v288, %v292
        %v294 = vlaneseq
        %v295 = vshrl.u32 %v294, 7
        %v296 = vsub.s32 1, %v295
        %v297 = vrot.slane %v288, %v296
        %v300 = vmul.f32 %v287, %v293
        %v301 = vmul.f32 %v286, %v297
        %302 = vrot.lane.b32.xlu0 %v277, 16
        %v303 = vpop.permute.xlu0 %302
        %304 = vrot.lane.b32.xlu0 %v278, 16
        %v305 = vpop.permute.xlu0 %304
        %vm306 = vcmp.lt.s32.totalorder %v284, 16
        %v307 = vsel %vm306, %v303, %v305
        %v308 = vsel %vm306, %v305, %v303
        %s309 = scalar_lea.vmem %s1, 2
        %v310 = vld [vmem:[%s309] sm:$0x3]
        %v312 = vlaneseq
        %v313 = vshrl.u32 %v312, 7
        %v314 = vsub.s32 0, %v313
        %v315 = vrot.slane %v310, %v314
        %v316 = vlaneseq
        %v317 = vshrl.u32 %v316, 7
        %v318 = vsub.s32 1, %v317
        %v319 = vrot.slane %v310, %v318
        %v322 = vmul.f32 %v308, %v315
        %v323 = vmul.f32 %v307, %v319
        %324 = vrot.lane.b32.xlu0 %v277, 15
        %v325 = vpop.permute.xlu0 %324
        %326 = vrot.lane.b32.xlu0 %v278, 15
        %v327 = vpop.permute.xlu0 %326
        %vm328 = vcmp.lt.s32.totalorder %v284, 15
        %v329 = vsel %vm328, %v325, %v327
        %v330 = vsel %vm328, %v327, %v325
        %s331 = scalar_lea.vmem %s1, 4
        %v332 = vld [vmem:[%s331] sm:$0x3]
        %v334 = vlaneseq
        %v335 = vshrl.u32 %v334, 7
        %v336 = vsub.s32 0, %v335
        %v337 = vrot.slane %v332, %v336
        %v338 = vlaneseq
        %v339 = vshrl.u32 %v338, 7
        %v340 = vsub.s32 1, %v339
        %v341 = vrot.slane %v332, %v340
        %v344 = vmul.f32 %v330, %v337
        %v345 = vmul.f32 %v329, %v341
        %346 = vrot.lane.b32.xlu0 %v277, 1
        %v347 = vpop.permute.xlu0 %346
        %348 = vrot.lane.b32.xlu0 %v278, 1
        %v349 = vpop.permute.xlu0 %348
        %vm350 = vcmp.lt.s32.totalorder %v284, 1
        %v351 = vsel %vm350, %v347, %v349
        %v352 = vsel %vm350, %v349, %v347
        %s353 = scalar_lea.vmem %s1, 6
        %v354 = vld [vmem:[%s353] sm:$0x3]
        %v356 = vlaneseq
        %v357 = vshrl.u32 %v356, 7
        %v358 = vsub.s32 0, %v357
        %v359 = vrot.slane %v354, %v358
        %v360 = vlaneseq
        %v361 = vshrl.u32 %v360, 7
        %v362 = vsub.s32 1, %v361
        %v363 = vrot.slane %v354, %v362
        %v366 = vmul.f32 %v352, %v359
        %v367 = vmul.f32 %v351, %v363
        %368 = vrot.lane.b32.xlu0 %v277, 127
        %v369 = vpop.permute.xlu0 %368
        %370 = vrot.lane.b32.xlu0 %v278, 127
        %v371 = vpop.permute.xlu0 %370
        %vm372 = vcmp.lt.s32.totalorder %v284, 127
        %v373 = vsel %vm372, %v369, %v371
        %v374 = vsel %vm372, %v371, %v369
        %s375 = scalar_lea.vmem %s1, 10
        %v376 = vld [vmem:[%s375] sm:$0x3]
        %v378 = vlaneseq
        %v379 = vshrl.u32 %v378, 7
        %v380 = vsub.s32 0, %v379
        %v381 = vrot.slane %v376, %v380
        %v382 = vlaneseq
        %v383 = vshrl.u32 %v382, 7
        %v384 = vsub.s32 1, %v383
        %v385 = vrot.slane %v376, %v384
        %v388 = vmul.f32 %v373, %v381
        %v389 = vmul.f32 %v374, %v385
        %390 = vrot.lane.b32.xlu0 %v277, 113
        %v391 = vpop.permute.xlu0 %390
        %392 = vrot.lane.b32.xlu0 %v278, 113
        %v393 = vpop.permute.xlu0 %392
        %vm394 = vcmp.lt.s32.totalorder %v284, 113
        %v395 = vsel %vm394, %v391, %v393
        %v396 = vsel %vm394, %v393, %v391
        %s397 = scalar_lea.vmem %s1, 12
        %v398 = vld [vmem:[%s397] sm:$0x3]
        %v400 = vlaneseq
        %v401 = vshrl.u32 %v400, 7
        %v402 = vsub.s32 0, %v401
        %v403 = vrot.slane %v398, %v402
        %v404 = vlaneseq
        %v405 = vshrl.u32 %v404, 7
        %v406 = vsub.s32 1, %v405
        %v407 = vrot.slane %v398, %v406
        %v410 = vmul.f32 %v395, %v403
        %v411 = vmul.f32 %v396, %v407
        %412 = vrot.lane.b32.xlu0 %v277, 112
        %v413 = vpop.permute.xlu0 %412
        %414 = vrot.lane.b32.xlu0 %v278, 112
        %v415 = vpop.permute.xlu0 %414
        %vm416 = vcmp.lt.s32.totalorder %v284, 112
        %v417 = vsel %vm416, %v413, %v415
        %v418 = vsel %vm416, %v415, %v413
        %s419 = scalar_lea.vmem %s1, 14
        %v420 = vld [vmem:[%s419] sm:$0x3]
        %v422 = vlaneseq
        %v423 = vshrl.u32 %v422, 7
        %v424 = vsub.s32 0, %v423
        %v425 = vrot.slane %v420, %v424
        %v426 = vlaneseq
        %v427 = vshrl.u32 %v426, 7
        %v428 = vsub.s32 1, %v427
        %v429 = vrot.slane %v420, %v428
        %v432 = vmul.f32 %v417, %v425
        %v433 = vmul.f32 %v418, %v429
        %434 = vrot.lane.b32.xlu0 %v277, 111
        %v435 = vpop.permute.xlu0 %434
        %436 = vrot.lane.b32.xlu0 %v278, 111
        %v437 = vpop.permute.xlu0 %436
        %vm438 = vcmp.lt.s32.totalorder %v284, 111
        %v439 = vsel %vm438, %v435, %v437
        %v440 = vsel %vm438, %v437, %v435
        %s441 = scalar_lea.vmem %s1, 16
        %v442 = vld [vmem:[%s441] sm:$0x3]
        %v444 = vlaneseq
        %v445 = vshrl.u32 %v444, 7
        %v446 = vsub.s32 0, %v445
        %v447 = vrot.slane %v442, %v446
        %v448 = vlaneseq
        %v449 = vshrl.u32 %v448, 7
        %v450 = vsub.s32 1, %v449
        %v451 = vrot.slane %v442, %v450
        %v454 = vmul.f32 %v439, %v447
        %v455 = vmul.f32 %v440, %v451
        %v456 = vld [vmem:[%s2] sm:$0xff]
        %v457 = vld [vmem:[%s2 + $0x8] sm:$0xff]
        %v458 = vld [vmem:[%s2 + $0x10] sm:$0xff]
        %vm459 = vcmask 588800
        %v461 = vsel %vm459, %v456, 0
        %v464 = vsel %vm459, %v457, 0
        %v467 = vsel %vm459, %v458, 0
        %469 = vmatprep.subr.mxu0 0.0
        %470 = vmatpush1.msra.mxu0 0.0
        %471 = vmatprep.subr.mxu0 0.0
        %472 = vmatpush1.msra.mxu0 0.0
        %473 = vmatprep.subr.mxu0 0.0
        %474 = vmatpush1.msra.mxu0 0.0
        %475 = vmatprep.subr.mxu0 0.0
        %476 = vmatpush1.msra.mxu0 0.0
        %477 = vmatprep.subr.mxu0 0.0
        %478 = vmatpush1.msra.mxu0 0.0
        %479 = vmatprep.subr.mxu0 0.0
        %480 = vmatpush1.msra.mxu0 0.0
        %481 = vmatprep.subr.mxu0 0.0
        %482 = vmatpush1.msra.mxu0 0.0
        %483 = vmatprep.subr.mxu0 %v455
        %484 = vmatpush1.msra.mxu0 %v454
        %485 = vmatprep.subr.mxu0 %v433
        %486 = vmatpush1.msra.mxu0 %v432
        %487 = vmatprep.subr.mxu0 %v411
        %488 = vmatpush1.msra.mxu0 %v410
        %489 = vmatprep.subr.mxu0 %v389
        %490 = vmatpush1.msra.mxu0 %v388
        %491 = vmatprep.subr.mxu0 %v278
        %492 = vmatpush1.msra.mxu0 %v277
        %493 = vmatprep.subr.mxu0 %v367
        %494 = vmatpush1.msra.mxu0 %v366
        %495 = vmatprep.subr.mxu0 %v345
        %496 = vmatpush1.msra.mxu0 %v344
        %497 = vmatprep.subr.mxu0 %v323
        %498 = vmatpush1.msra.mxu0 %v322
        %499 = vmatprep.subr.mxu0 %v301
        %500 = vmatpush1.msra.mxu0 %v300
        %501 = vmatprep.subr.mxu0 0.0
        %502 = vmatpush2.msra.mxu0 0.0
        %503 = vmatprep.subr.mxu0 0.0
        %504 = vmatpush2.msra.mxu0 0.0
        %505 = vmatprep.subr.mxu0 0.0
        %506 = vmatpush2.msra.mxu0 0.0
        %507 = vmatprep.subr.mxu0 0.0
        %508 = vmatpush2.msra.mxu0 0.0
        %509 = vmatprep.subr.mxu0 0.0
        %510 = vmatpush2.msra.mxu0 0.0
        %511 = vmatprep.subr.mxu0 0.0
        %512 = vmatpush2.msra.mxu0 0.0
        %513 = vmatprep.subr.mxu0 0.0
        %514 = vmatpush2.msra.mxu0 0.0
        %515 = vmatprep.subr.mxu0 0.0
        %516 = vmatpush2.msra.mxu0 0.0
        %517 = vmatprep.subr.mxu0 0.0
        %518 = vmatpush2.msra.mxu0 0.0
        %519 = vmatprep.subr.mxu0 0.0
        %520 = vmatpush2.msra.mxu0 0.0
        %521 = vmatprep.subr.mxu0 0.0
        %522 = vmatpush2.msra.mxu0 0.0
        %523 = vmatprep.subr.mxu0 0.0
        %524 = vmatpush2.msra.mxu0 0.0
        %525 = vmatprep.subr.mxu0 0.0
        %526 = vmatpush2.msra.mxu0 0.0
        %527 = vmatprep.subr.mxu0 0.0
        %528 = vmatpush2.msra.mxu0 0.0
        %529 = vmatprep.subr.mxu0 0.0
        %530 = vmatpush2.msra.mxu0 0.0
        %531 = vmatprep.subr.mxu0 0.0
        %532 = vmatpush2.msra.mxu0 0.0
        %533 = vmatprep.mubr.f32.mxu0 0.0
        %534 = vmatmul.mubr.f32.gmra.mxu0 %v461
        %v535 = vpop.f32.mrf.mxu0
        %v536 = vadd.f32 0.0, %v535
        %v537 = vpop.f32.mrf.mxu0
        %v538 = vadd.f32 0.0, %v537
        %539 = vmatprep.mubr.f32.mxu0 0.0
        %540 = vmatmul.mubr.f32.gmra.mxu0 %v464
        %v541 = vpop.f32.mrf.mxu0
        %v542 = vadd.f32 0.0, %v541
        %v543 = vpop.f32.mrf.mxu0
        %v544 = vadd.f32 0.0, %v543
        %545 = vmatprep.mubr.f32.mxu0 0.0
        %546 = vmatmul.mubr.f32.gmra.mxu0 %v467
        %v547 = vpop.f32.mrf.mxu0
        %v548 = vadd.f32 0.0, %v547
        %v549 = vpop.f32.mrf.mxu0
        %v550 = vadd.f32 0.0, %v549
        %551 = vdwg.mxu0
        %v552 = vmax.f32 %v536, 0.0
        %v553 = vmax.f32 %v538, 0.0
        %v554 = vmax.f32 %v542, 0.0
        %v555 = vmax.f32 %v544, 0.0
        %v556 = vmax.f32 %v548, 0.0
        %v557 = vmax.f32 %v550, 0.0
        %s558 = scalar_lea.vmem %s3, 96
        %v559 = vld [vmem:[%s558] sm:$0xff]
        %v560 = vld [vmem:[%s558 + $0x8] sm:$0xff]
        %v561 = vld [vmem:[%s558 + $0x10] sm:$0xff]
        %563 = vset.pattern.permute.xlu0 0
        %564 = vperm.xlu0 %563, %v559
        %v565 = vpop.permute.xlu0 %564
        %568 = vset.pattern.permute.xlu0 0
        %569 = vperm.xlu0 %568, %v560
        %v570 = vpop.permute.xlu0 %569
        %573 = vset.pattern.permute.xlu0 0
        %574 = vperm.xlu0 %573, %v561
        %v575 = vpop.permute.xlu0 %574
        %v577 = vmul.f32 %v552, %v565
        %v578 = vmul.f32 %v553, %v565
        %v579 = vmul.f32 %v554, %v570
        %v580 = vmul.f32 %v555, %v570
        %v581 = vmul.f32 %v556, %v575
        %v582 = vmul.f32 %v557, %v575
        %583 = vrot.lane.b32.xlu0 %v552, 17
        %v584 = vpop.permute.xlu0 %583
        %585 = vrot.lane.b32.xlu0 %v554, 17
        %v586 = vpop.permute.xlu0 %585
        %587 = vrot.lane.b32.xlu0 %v556, 17
        %v588 = vpop.permute.xlu0 %587
        %589 = vrot.lane.b32.xlu0 %v553, 17
        %v590 = vpop.permute.xlu0 %589
        %591 = vrot.lane.b32.xlu0 %v555, 17
        %v592 = vpop.permute.xlu0 %591
        %593 = vrot.lane.b32.xlu0 %v557, 17
        %v594 = vpop.permute.xlu0 %593
        %v595 = vsel %vm285, %v584, %v590
        %v596 = vsel %vm285, %v586, %v592
        %v597 = vsel %vm285, %v588, %v594
        %v598 = vsel %vm285, %v590, %v584
        %v599 = vsel %vm285, %v592, %v586
        %v600 = vsel %vm285, %v594, %v588
        %v601 = vmul.f32 %v598, %v293
        %v602 = vmul.f32 %v595, %v297
        %v603 = vmul.f32 %v599, %v293
        %v604 = vmul.f32 %v596, %v297
        %v605 = vmul.f32 %v600, %v293
        %v606 = vmul.f32 %v597, %v297
        %v607 = vld [vmem:[%s3] sm:$0xff]
        %v608 = vld [vmem:[%s3 + $0x8] sm:$0xff]
        %v609 = vld [vmem:[%s3 + $0x10] sm:$0xff]
        %611 = vset.pattern.permute.xlu0 0
        %612 = vperm.xlu0 %611, %v607
        %v613 = vpop.permute.xlu0 %612
        %616 = vset.pattern.permute.xlu0 0
        %617 = vperm.xlu0 %616, %v608
        %v618 = vpop.permute.xlu0 %617
        %621 = vset.pattern.permute.xlu0 0
        %622 = vperm.xlu0 %621, %v609
        %v623 = vpop.permute.xlu0 %622
        %v625 = vmul.f32 %v601, %v613
        %v626 = vmul.f32 %v602, %v613
        %v627 = vmul.f32 %v603, %v618
        %v628 = vmul.f32 %v604, %v618
        %v629 = vmul.f32 %v605, %v623
        %v630 = vmul.f32 %v606, %v623
        %v631 = vadd.f32 %v577, %v625
        %v632 = vadd.f32 %v578, %v626
        %v633 = vadd.f32 %v579, %v627
        %v634 = vadd.f32 %v580, %v628
        %v635 = vadd.f32 %v581, %v629
        %v636 = vadd.f32 %v582, %v630
        %637 = vrot.lane.b32.xlu0 %v552, 16
        %v638 = vpop.permute.xlu0 %637
        %639 = vrot.lane.b32.xlu0 %v554, 16
        %v640 = vpop.permute.xlu0 %639
        %641 = vrot.lane.b32.xlu0 %v556, 16
        %v642 = vpop.permute.xlu0 %641
        %643 = vrot.lane.b32.xlu0 %v553, 16
        %v644 = vpop.permute.xlu0 %643
        %645 = vrot.lane.b32.xlu0 %v555, 16
        %v646 = vpop.permute.xlu0 %645
        %647 = vrot.lane.b32.xlu0 %v557, 16
        %v648 = vpop.permute.xlu0 %647
        %v649 = vsel %vm306, %v638, %v644
        %v650 = vsel %vm306, %v640, %v646
        %v651 = vsel %vm306, %v642, %v648
        %v652 = vsel %vm306, %v644, %v638
        %v653 = vsel %vm306, %v646, %v640
        %v654 = vsel %vm306, %v648, %v642
        %v655 = vmul.f32 %v652, %v315
        %v656 = vmul.f32 %v649, %v319
        %v657 = vmul.f32 %v653, %v315
        %v658 = vmul.f32 %v650, %v319
        %v659 = vmul.f32 %v654, %v315
        %v660 = vmul.f32 %v651, %v319
        %s661 = scalar_lea.vmem %s3, 24
        %v662 = vld [vmem:[%s661] sm:$0xff]
        %v663 = vld [vmem:[%s661 + $0x8] sm:$0xff]
        %v664 = vld [vmem:[%s661 + $0x10] sm:$0xff]
        %666 = vset.pattern.permute.xlu0 0
        %667 = vperm.xlu0 %666, %v662
        %v668 = vpop.permute.xlu0 %667
        %671 = vset.pattern.permute.xlu0 0
        %672 = vperm.xlu0 %671, %v663
        %v673 = vpop.permute.xlu0 %672
        %676 = vset.pattern.permute.xlu0 0
        %677 = vperm.xlu0 %676, %v664
        %v678 = vpop.permute.xlu0 %677
        %v680 = vmul.f32 %v655, %v668
        %v681 = vmul.f32 %v656, %v668
        %v682 = vmul.f32 %v657, %v673
        %v683 = vmul.f32 %v658, %v673
        %v684 = vmul.f32 %v659, %v678
        %v685 = vmul.f32 %v660, %v678
        %v686 = vadd.f32 %v631, %v680
        %v687 = vadd.f32 %v632, %v681
        %v688 = vadd.f32 %v633, %v682
        %v689 = vadd.f32 %v634, %v683
        %v690 = vadd.f32 %v635, %v684
        %v691 = vadd.f32 %v636, %v685
        %692 = vrot.lane.b32.xlu0 %v552, 15
        %v693 = vpop.permute.xlu0 %692
        %694 = vrot.lane.b32.xlu0 %v554, 15
        %v695 = vpop.permute.xlu0 %694
        %696 = vrot.lane.b32.xlu0 %v556, 15
        %v697 = vpop.permute.xlu0 %696
        %698 = vrot.lane.b32.xlu0 %v553, 15
        %v699 = vpop.permute.xlu0 %698
        %700 = vrot.lane.b32.xlu0 %v555, 15
        %v701 = vpop.permute.xlu0 %700
        %702 = vrot.lane.b32.xlu0 %v557, 15
        %v703 = vpop.permute.xlu0 %702
        %v704 = vsel %vm328, %v693, %v699
        %v705 = vsel %vm328, %v695, %v701
        %v706 = vsel %vm328, %v697, %v703
        %v707 = vsel %vm328, %v699, %v693
        %v708 = vsel %vm328, %v701, %v695
        %v709 = vsel %vm328, %v703, %v697
        %v710 = vmul.f32 %v707, %v337
        %v711 = vmul.f32 %v704, %v341
        %v712 = vmul.f32 %v708, %v337
        %v713 = vmul.f32 %v705, %v341
        %v714 = vmul.f32 %v709, %v337
        %v715 = vmul.f32 %v706, %v341
        %s716 = scalar_lea.vmem %s3, 48
        %v717 = vld [vmem:[%s716] sm:$0xff]
        %v718 = vld [vmem:[%s716 + $0x8] sm:$0xff]
        %v719 = vld [vmem:[%s716 + $0x10] sm:$0xff]
        %721 = vset.pattern.permute.xlu0 0
        %722 = vperm.xlu0 %721, %v717
        %v723 = vpop.permute.xlu0 %722
        %726 = vset.pattern.permute.xlu0 0
        %727 = vperm.xlu0 %726, %v718
        %v728 = vpop.permute.xlu0 %727
        %731 = vset.pattern.permute.xlu0 0
        %732 = vperm.xlu0 %731, %v719
        %v733 = vpop.permute.xlu0 %732
        %v735 = vmul.f32 %v710, %v723
        %v736 = vmul.f32 %v711, %v723
        %v737 = vmul.f32 %v712, %v728
        %v738 = vmul.f32 %v713, %v728
        %v739 = vmul.f32 %v714, %v733
        %v740 = vmul.f32 %v715, %v733
        %v741 = vadd.f32 %v686, %v735
        %v742 = vadd.f32 %v687, %v736
        %v743 = vadd.f32 %v688, %v737
        %v744 = vadd.f32 %v689, %v738
        %v745 = vadd.f32 %v690, %v739
        %v746 = vadd.f32 %v691, %v740
        %747 = vrot.lane.b32.xlu0 %v552, 1
        %v748 = vpop.permute.xlu0 %747
        %749 = vrot.lane.b32.xlu0 %v554, 1
        %v750 = vpop.permute.xlu0 %749
        %751 = vrot.lane.b32.xlu0 %v556, 1
        %v752 = vpop.permute.xlu0 %751
        %753 = vrot.lane.b32.xlu0 %v553, 1
        %v754 = vpop.permute.xlu0 %753
        %755 = vrot.lane.b32.xlu0 %v555, 1
        %v756 = vpop.permute.xlu0 %755
        %757 = vrot.lane.b32.xlu0 %v557, 1
        %v758 = vpop.permute.xlu0 %757
        %v759 = vsel %vm350, %v748, %v754
        %v760 = vsel %vm350, %v750, %v756
        %v761 = vsel %vm350, %v752, %v758
        %v762 = vsel %vm350, %v754, %v748
        %v763 = vsel %vm350, %v756, %v750
        %v764 = vsel %vm350, %v758, %v752
        %v765 = vmul.f32 %v762, %v359
        %v766 = vmul.f32 %v759, %v363
        %v767 = vmul.f32 %v763, %v359
        %v768 = vmul.f32 %v760, %v363
        %v769 = vmul.f32 %v764, %v359
        %v770 = vmul.f32 %v761, %v363
        %s771 = scalar_lea.vmem %s3, 72
        %v772 = vld [vmem:[%s771] sm:$0xff]
        %v773 = vld [vmem:[%s771 + $0x8] sm:$0xff]
        %v774 = vld [vmem:[%s771 + $0x10] sm:$0xff]
        %776 = vset.pattern.permute.xlu0 0
        %777 = vperm.xlu0 %776, %v772
        %v778 = vpop.permute.xlu0 %777
        %781 = vset.pattern.permute.xlu0 0
        %782 = vperm.xlu0 %781, %v773
        %v783 = vpop.permute.xlu0 %782
        %786 = vset.pattern.permute.xlu0 0
        %787 = vperm.xlu0 %786, %v774
        %v788 = vpop.permute.xlu0 %787
        %v790 = vmul.f32 %v765, %v778
        %v791 = vmul.f32 %v766, %v778
        %v792 = vmul.f32 %v767, %v783
        %v793 = vmul.f32 %v768, %v783
        %v794 = vmul.f32 %v769, %v788
        %v795 = vmul.f32 %v770, %v788
        %v796 = vadd.f32 %v741, %v790
        %v797 = vadd.f32 %v742, %v791
        %v798 = vadd.f32 %v743, %v792
        %v799 = vadd.f32 %v744, %v793
        %v800 = vadd.f32 %v745, %v794
        %v801 = vadd.f32 %v746, %v795
        %802 = vrot.lane.b32.xlu0 %v552, 127
        %v803 = vpop.permute.xlu0 %802
        %804 = vrot.lane.b32.xlu0 %v554, 127
        %v805 = vpop.permute.xlu0 %804
        %806 = vrot.lane.b32.xlu0 %v556, 127
        %v807 = vpop.permute.xlu0 %806
        %808 = vrot.lane.b32.xlu0 %v553, 127
        %v809 = vpop.permute.xlu0 %808
        %810 = vrot.lane.b32.xlu0 %v555, 127
        %v811 = vpop.permute.xlu0 %810
        %812 = vrot.lane.b32.xlu0 %v557, 127
        %v813 = vpop.permute.xlu0 %812
        %v814 = vsel %vm372, %v803, %v809
        %v815 = vsel %vm372, %v805, %v811
        %v816 = vsel %vm372, %v807, %v813
        %v817 = vsel %vm372, %v809, %v803
        %v818 = vsel %vm372, %v811, %v805
        %v819 = vsel %vm372, %v813, %v807
        %v820 = vmul.f32 %v814, %v381
        %v821 = vmul.f32 %v817, %v385
        %v822 = vmul.f32 %v815, %v381
        %v823 = vmul.f32 %v818, %v385
        %v824 = vmul.f32 %v816, %v381
        %v825 = vmul.f32 %v819, %v385
        %s826 = scalar_lea.vmem %s3, 120
        %v827 = vld [vmem:[%s826] sm:$0xff]
        %v828 = vld [vmem:[%s826 + $0x8] sm:$0xff]
        %v829 = vld [vmem:[%s826 + $0x10] sm:$0xff]
        %831 = vset.pattern.permute.xlu0 0
        %832 = vperm.xlu0 %831, %v827
        %v833 = vpop.permute.xlu0 %832
        %836 = vset.pattern.permute.xlu0 0
        %837 = vperm.xlu0 %836, %v828
        %v838 = vpop.permute.xlu0 %837
        %841 = vset.pattern.permute.xlu0 0
        %842 = vperm.xlu0 %841, %v829
        %v843 = vpop.permute.xlu0 %842
        %v845 = vmul.f32 %v820, %v833
        %v846 = vmul.f32 %v821, %v833
        %v847 = vmul.f32 %v822, %v838
        %v848 = vmul.f32 %v823, %v838
        %v849 = vmul.f32 %v824, %v843
        %v850 = vmul.f32 %v825, %v843
        %v851 = vadd.f32 %v796, %v845
        %v852 = vadd.f32 %v797, %v846
        %v853 = vadd.f32 %v798, %v847
        %v854 = vadd.f32 %v799, %v848
        %v855 = vadd.f32 %v800, %v849
        %v856 = vadd.f32 %v801, %v850
        %857 = vrot.lane.b32.xlu0 %v552, 113
        %v858 = vpop.permute.xlu0 %857
        %859 = vrot.lane.b32.xlu0 %v554, 113
        %v860 = vpop.permute.xlu0 %859
        %861 = vrot.lane.b32.xlu0 %v556, 113
        %v862 = vpop.permute.xlu0 %861
        %863 = vrot.lane.b32.xlu0 %v553, 113
        %v864 = vpop.permute.xlu0 %863
        %865 = vrot.lane.b32.xlu0 %v555, 113
        %v866 = vpop.permute.xlu0 %865
        %867 = vrot.lane.b32.xlu0 %v557, 113
        %v868 = vpop.permute.xlu0 %867
        %v869 = vsel %vm394, %v858, %v864
        %v870 = vsel %vm394, %v860, %v866
        %v871 = vsel %vm394, %v862, %v868
        %v872 = vsel %vm394, %v864, %v858
        %v873 = vsel %vm394, %v866, %v860
        %v874 = vsel %vm394, %v868, %v862
        %v875 = vmul.f32 %v869, %v403
        %v876 = vmul.f32 %v872, %v407
        %v877 = vmul.f32 %v870, %v403
        %v878 = vmul.f32 %v873, %v407
        %v879 = vmul.f32 %v871, %v403
        %v880 = vmul.f32 %v874, %v407
        %s881 = scalar_lea.vmem %s3, 144
        %v882 = vld [vmem:[%s881] sm:$0xff]
        %v883 = vld [vmem:[%s881 + $0x8] sm:$0xff]
        %v884 = vld [vmem:[%s881 + $0x10] sm:$0xff]
        %886 = vset.pattern.permute.xlu0 0
        %887 = vperm.xlu0 %886, %v882
        %v888 = vpop.permute.xlu0 %887
        %891 = vset.pattern.permute.xlu0 0
        %892 = vperm.xlu0 %891, %v883
        %v893 = vpop.permute.xlu0 %892
        %896 = vset.pattern.permute.xlu0 0
        %897 = vperm.xlu0 %896, %v884
        %v898 = vpop.permute.xlu0 %897
        %v900 = vmul.f32 %v875, %v888
        %v901 = vmul.f32 %v876, %v888
        %v902 = vmul.f32 %v877, %v893
        %v903 = vmul.f32 %v878, %v893
        %v904 = vmul.f32 %v879, %v898
        %v905 = vmul.f32 %v880, %v898
        %v906 = vadd.f32 %v851, %v900
        %v907 = vadd.f32 %v852, %v901
        %v908 = vadd.f32 %v853, %v902
        %v909 = vadd.f32 %v854, %v903
        %v910 = vadd.f32 %v855, %v904
        %v911 = vadd.f32 %v856, %v905
        %912 = vrot.lane.b32.xlu0 %v552, 112
        %v913 = vpop.permute.xlu0 %912
        %914 = vrot.lane.b32.xlu0 %v554, 112
        %v915 = vpop.permute.xlu0 %914
        %916 = vrot.lane.b32.xlu0 %v556, 112
        %v917 = vpop.permute.xlu0 %916
        %918 = vrot.lane.b32.xlu0 %v553, 112
        %v919 = vpop.permute.xlu0 %918
        %920 = vrot.lane.b32.xlu0 %v555, 112
        %v921 = vpop.permute.xlu0 %920
        %922 = vrot.lane.b32.xlu0 %v557, 112
        %v923 = vpop.permute.xlu0 %922
        %v924 = vsel %vm416, %v913, %v919
        %v925 = vsel %vm416, %v915, %v921
        %v926 = vsel %vm416, %v917, %v923
        %v927 = vsel %vm416, %v919, %v913
        %v928 = vsel %vm416, %v921, %v915
        %v929 = vsel %vm416, %v923, %v917
        %v930 = vmul.f32 %v924, %v425
        %v931 = vmul.f32 %v927, %v429
        %v932 = vmul.f32 %v925, %v425
        %v933 = vmul.f32 %v928, %v429
        %v934 = vmul.f32 %v926, %v425
        %v935 = vmul.f32 %v929, %v429
        %s936 = scalar_lea.vmem %s3, 168
        %v937 = vld [vmem:[%s936] sm:$0xff]
        %v938 = vld [vmem:[%s936 + $0x8] sm:$0xff]
        %v939 = vld [vmem:[%s936 + $0x10] sm:$0xff]
        %941 = vset.pattern.permute.xlu0 0
        %942 = vperm.xlu0 %941, %v937
        %v943 = vpop.permute.xlu0 %942
        %946 = vset.pattern.permute.xlu0 0
        %947 = vperm.xlu0 %946, %v938
        %v948 = vpop.permute.xlu0 %947
        %951 = vset.pattern.permute.xlu0 0
        %952 = vperm.xlu0 %951, %v939
        %v953 = vpop.permute.xlu0 %952
        %v955 = vmul.f32 %v930, %v943
        %v956 = vmul.f32 %v931, %v943
        %v957 = vmul.f32 %v932, %v948
        %v958 = vmul.f32 %v933, %v948
        %v959 = vmul.f32 %v934, %v953
        %v960 = vmul.f32 %v935, %v953
        %v961 = vadd.f32 %v906, %v955
        %v962 = vadd.f32 %v907, %v956
        %v963 = vadd.f32 %v908, %v957
        %v964 = vadd.f32 %v909, %v958
        %v965 = vadd.f32 %v910, %v959
        %v966 = vadd.f32 %v911, %v960
        %967 = vrot.lane.b32.xlu0 %v552, 111
        %v968 = vpop.permute.xlu0 %967
        %969 = vrot.lane.b32.xlu0 %v554, 111
        %v970 = vpop.permute.xlu0 %969
        %971 = vrot.lane.b32.xlu0 %v556, 111
        %v972 = vpop.permute.xlu0 %971
        %973 = vrot.lane.b32.xlu0 %v553, 111
        %v974 = vpop.permute.xlu0 %973
        %975 = vrot.lane.b32.xlu0 %v555, 111
        %v976 = vpop.permute.xlu0 %975
        %977 = vrot.lane.b32.xlu0 %v557, 111
        %v978 = vpop.permute.xlu0 %977
        %v979 = vsel %vm438, %v968, %v974
        %v980 = vsel %vm438, %v970, %v976
        %v981 = vsel %vm438, %v972, %v978
        %v982 = vsel %vm438, %v974, %v968
        %v983 = vsel %vm438, %v976, %v970
        %v984 = vsel %vm438, %v978, %v972
        %v985 = vmul.f32 %v979, %v447
        %v986 = vmul.f32 %v982, %v451
        %v987 = vmul.f32 %v980, %v447
        %v988 = vmul.f32 %v983, %v451
        %v989 = vmul.f32 %v981, %v447
        %v990 = vmul.f32 %v984, %v451
        %s991 = scalar_lea.vmem %s3, 192
        %v992 = vld [vmem:[%s991] sm:$0xff]
        %v993 = vld [vmem:[%s991 + $0x8] sm:$0xff]
        %v994 = vld [vmem:[%s991 + $0x10] sm:$0xff]
        %996 = vset.pattern.permute.xlu0 0
        %997 = vperm.xlu0 %996, %v992
        %v998 = vpop.permute.xlu0 %997
        %1001 = vset.pattern.permute.xlu0 0
        %1002 = vperm.xlu0 %1001, %v993
        %v1003 = vpop.permute.xlu0 %1002
        %1006 = vset.pattern.permute.xlu0 0
        %1007 = vperm.xlu0 %1006, %v994
        %v1008 = vpop.permute.xlu0 %1007
        %v1010 = vmul.f32 %v985, %v998
        %v1011 = vmul.f32 %v986, %v998
        %v1012 = vmul.f32 %v987, %v1003
        %v1013 = vmul.f32 %v988, %v1003
        %v1014 = vmul.f32 %v989, %v1008
        %v1015 = vmul.f32 %v990, %v1008
        %v1016 = vadd.f32 %v961, %v1010
        %v1017 = vadd.f32 %v962, %v1011
        %v1018 = vadd.f32 %v963, %v1012
        %v1019 = vadd.f32 %v964, %v1013
        %v1020 = vadd.f32 %v965, %v1014
        %v1021 = vadd.f32 %v966, %v1015
        %v1022 = vld [vmem:[%s4] sm:$0xff]
        %v1023 = vld [vmem:[%s4 + $0x8] sm:$0xff]
        %v1024 = vld [vmem:[%s4 + $0x10] sm:$0xff]
        %1026 = vset.pattern.permute.xlu0 0
        %1027 = vperm.xlu0 %1026, %v1022
        %v1028 = vpop.permute.xlu0 %1027
        %1031 = vset.pattern.permute.xlu0 0
        %1032 = vperm.xlu0 %1031, %v1023
        %v1033 = vpop.permute.xlu0 %1032
        %1036 = vset.pattern.permute.xlu0 0
        %1037 = vperm.xlu0 %1036, %v1024
        %v1038 = vpop.permute.xlu0 %1037
        %v1040 = vadd.f32 %v1016, %v1028
        %v1041 = vadd.f32 %v1017, %v1028
        %v1042 = vadd.f32 %v1018, %v1033
        %v1043 = vadd.f32 %v1019, %v1033
        %v1044 = vadd.f32 %v1020, %v1038
        %v1045 = vadd.f32 %v1021, %v1038
        %v1046 = vmax.f32 %v1040, 0.0
        %v1047 = vmax.f32 %v1041, 0.0
        %v1048 = vmax.f32 %v1042, 0.0
        %v1049 = vmax.f32 %v1043, 0.0
        %v1050 = vmax.f32 %v1044, 0.0
        %v1051 = vmax.f32 %v1045, 0.0
        %v1052 = vld [vmem:[%s5] sm:$0xf]
        %v1053 = vld [vmem:[%s6] sm:$0xf]
        %1055 = vset.pattern.permute.xlu0 0
        %1056 = vperm.xlu0 %1055, %v1053
        %v1057 = vpop.permute.xlu0 %1056
        %vm1059 = vcmask 195584
        %v1061 = vsel %vm1059, %v1052, 0
        %1063 = vmatprep.subr.mxu0 0.0
        %1064 = vmatpush1.msra.mxu0 0.0
        %1065 = vmatprep.subr.mxu0 0.0
        %1066 = vmatpush1.msra.mxu0 0.0
        %1067 = vmatprep.subr.mxu0 0.0
        %1068 = vmatpush1.msra.mxu0 0.0
        %1069 = vmatprep.subr.mxu0 0.0
        %1070 = vmatpush1.msra.mxu0 0.0
        %1071 = vmatprep.subr.mxu0 0.0
        %1072 = vmatpush1.msra.mxu0 0.0
        %1073 = vmatprep.subr.mxu0 0.0
        %1074 = vmatpush1.msra.mxu0 0.0
        %1075 = vmatprep.subr.mxu0 0.0
        %1076 = vmatpush1.msra.mxu0 0.0
        %1077 = vmatprep.subr.mxu0 0.0
        %1078 = vmatpush1.msra.mxu0 0.0
        %1079 = vmatprep.subr.mxu0 0.0
        %1080 = vmatpush1.msra.mxu0 0.0
        %1081 = vmatprep.subr.mxu0 0.0
        %1082 = vmatpush1.msra.mxu0 0.0
        %1083 = vmatprep.subr.mxu0 0.0
        %1084 = vmatpush1.msra.mxu0 0.0
        %1085 = vmatprep.subr.mxu0 0.0
        %1086 = vmatpush1.msra.mxu0 0.0
        %1087 = vmatprep.subr.mxu0 0.0
        %1088 = vmatpush1.msra.mxu0 0.0
        %1089 = vmatprep.subr.mxu0 %v1051
        %1090 = vmatpush1.msra.mxu0 %v1050
        %1091 = vmatprep.subr.mxu0 %v1049
        %1092 = vmatpush1.msra.mxu0 %v1048
        %1093 = vmatprep.subr.mxu0 %v1047
        %1094 = vmatpush1.msra.mxu0 %v1046
        %1095 = vmatprep.subr.mxu0 0.0
        %1096 = vmatpush2.msra.mxu0 0.0
        %1097 = vmatprep.subr.mxu0 0.0
        %1098 = vmatpush2.msra.mxu0 0.0
        %1099 = vmatprep.subr.mxu0 0.0
        %1100 = vmatpush2.msra.mxu0 0.0
        %1101 = vmatprep.subr.mxu0 0.0
        %1102 = vmatpush2.msra.mxu0 0.0
        %1103 = vmatprep.subr.mxu0 0.0
        %1104 = vmatpush2.msra.mxu0 0.0
        %1105 = vmatprep.subr.mxu0 0.0
        %1106 = vmatpush2.msra.mxu0 0.0
        %1107 = vmatprep.subr.mxu0 0.0
        %1108 = vmatpush2.msra.mxu0 0.0
        %1109 = vmatprep.subr.mxu0 0.0
        %1110 = vmatpush2.msra.mxu0 0.0
        %1111 = vmatprep.subr.mxu0 0.0
        %1112 = vmatpush2.msra.mxu0 0.0
        %1113 = vmatprep.subr.mxu0 0.0
        %1114 = vmatpush2.msra.mxu0 0.0
        %1115 = vmatprep.subr.mxu0 0.0
        %1116 = vmatpush2.msra.mxu0 0.0
        %1117 = vmatprep.subr.mxu0 0.0
        %1118 = vmatpush2.msra.mxu0 0.0
        %1119 = vmatprep.subr.mxu0 0.0
        %1120 = vmatpush2.msra.mxu0 0.0
        %1121 = vmatprep.subr.mxu0 0.0
        %1122 = vmatpush2.msra.mxu0 0.0
        %1123 = vmatprep.subr.mxu0 0.0
        %1124 = vmatpush2.msra.mxu0 0.0
        %1125 = vmatprep.subr.mxu0 0.0
        %1126 = vmatpush2.msra.mxu0 0.0
        %1127 = vmatprep.mubr.f32.mxu0 0.0
        %1128 = vmatmul.mubr.f32.gmra.mxu0 %v1061
        %v1129 = vpop.f32.mrf.mxu0
        %v1130 = vadd.f32 %v1057, %v1129
        %v1131 = vpop.f32.mrf.mxu0
        %v1132 = vadd.f32 %v1057, %v1131
        %1133 = vdwg.mxu0
        %v1134 = vadd.f32 %v1130, %v277
        %v1135 = vadd.f32 %v1132, %v278
        %v1136 = vmax.f32 %v1134, 0.0
        %v1137 = vmax.f32 %v1135, 0.0
        %v1140 = vcombine.low %v1136, %v1137
        %1142 = vst [vmem:[%s271] sm:$0xff] %v1140
        %s1143 = sand.u32 %s181, 1
        %s1144 = scalar_lea.sflag [#allocation3], %s1143
        %s1145 = sand.u32 %s181, 1
        %s1146 = smul.addr %s1145, 8
        %s1147 = scalar_lea.vmem [#allocation2], %s1146
        // Predicated region
        $region49: #{tpu_custom_call.1} parent=47 // pred_check
          %p1148 = pneg %p191
        $region50: #{tpu_custom_call.1} parent=47 // pred_check_branch
          %1150 = sbr.rel (%p1148) target = $region52
        $region51: #{tpu_custom_call.1} parent=47 // pred_region
          %s1152 = ssub.s32 128, 128
          %1153 = vsyncadd %s1144, %s1152
          %s1154 = smul.addr %s21, 2
          %s1155 = smul.addr %s1154, 64
          %s1156 = scalar_lea.hbm %s7, %s1155
          %s1158 = sshll.u32 %s1147, 4
          %s1159 = int_to_ptr.vmem [resolvable:$true] %s1158
          %1161 = dma.vmem_to_hbm [thread:$0]  %s1159, 128, %s1156, %s1144
        $region52: #{tpu_custom_call.1} parent=47 // pred_fallthru
          _
      $region48: #{tpu_custom_call.1} parent=5 // pred_fallthru
        _
      %p1162 = scmp.le.s32.totalorder 2, %s16
      // Predicated region
      $region53: #{tpu_custom_call.1} parent=5 // pred_check
        %p1163 = pneg %p1162
      $region54: #{tpu_custom_call.1} parent=5 // pred_check_branch
        %1165 = sbr.rel (%p1163) target = $region56
      $region55: #{tpu_custom_call.1} parent=5 // pred_region
        %s1166 = ssub.s32 %s16, 2
        // Predicated region
        $region57: #{tpu_custom_call.1} parent=55 // pred_check
          %p1167 = pneg %p197
        $region58: #{tpu_custom_call.1} parent=55 // pred_check_branch
          %1169 = sbr.rel (%p1167) target = $region60
        $region59: #{tpu_custom_call.1} parent=55 // pred_region
          %s1170 = sand.u32 %s182, 1
          %s1171 = scalar_lea.sflag [#allocation3], %s1170
          %s1172 = sand.u32 %s182, 1
          %s1173 = smul.addr %s1172, 8
          %s1174 = scalar_lea.vmem [#allocation2], %s1173
          %1175 = dma.done %s1171, 128
        $region60: #{tpu_custom_call.1} parent=55 // pred_fallthru
          _
      $region56: #{tpu_custom_call.1} parent=5 // pred_fallthru
        _
    $region6: #{tpu_custom_call.1} parent=1 // loop_footer
      %s20 = sadd.s32 1, %s16
    $region7: #{tpu_custom_call.1} parent=1 // loop_footer_branch
      %15 = sbr.rel target = $region3
    $region8: #{tpu_custom_call.1} parent=1 // loop_exit
      _
    %1176 = vsyncpa [#allocation3], 1
    %s1177 = scalar_lea.sflag [#allocation3], 1
    %1178 = vsyncpa %s1177, 1

</llo_original>
